<compile_context>
chip_gen: v7x
topology: tpu7x:2x2x1
jax: 0.10.0
libtpu: 0.0.40
codegen_flags: <defaults>
</compile_context>

<pallas_src>
import functools

import jax
import jax.numpy as jnp
from jax import lax
from jax.experimental import pallas as pl
from jax.experimental.pallas import tpu as pltpu


# -----------------------------------------------------------------------------
# Fused kernel (BatchNorms are pre-folded into weights/biases outside).
# -----------------------------------------------------------------------------
def _lbn_kernel(x_ref, w1_ref, b1_ref, wdw_ref, bdw_ref, w2_ref, b2_ref, o_ref,
                *, add_residual):
    TB, H, W, C_in = x_ref.shape
    C_mid = w1_ref.shape[1]
    C_out = w2_ref.shape[1]

    x = x_ref[...].astype(jnp.float32)                        # (TB, H, W, Cin)

    # ---- 1x1 expansion conv (+ folded BN bias) + ReLU6: one MXU matmul ----
    h = jnp.dot(x.reshape(TB * H * W, C_in), w1_ref[...],
                preferred_element_type=jnp.float32)
    h = jnp.clip(h + b1_ref[...], 0.0, 6.0)
    h = h.reshape(TB, H, W, C_mid)

    # ---- depthwise 3x3 conv (+ folded BN bias) + ReLU6 ----
    # Zero-pad: 1 row each side of H (major-dim concat) and 8 columns each
    # side of W (sublane-aligned concat); then 9 static tap slices.
    PW = 8
    zw = jnp.zeros((TB, H, PW, C_mid), jnp.float32)
    hp = jnp.concatenate([zw, h, zw], axis=2)                 # (TB, H, W+16, C)
    zh = jnp.zeros((TB, 1, W + 2 * PW, C_mid), jnp.float32)
    hp = jnp.concatenate([zh, hp, zh], axis=1)                # (TB, H+2, W+16, C)

    wdw = wdw_ref[...]                                        # (9, C_mid)
    acc = jnp.zeros((TB, H, W, C_mid), jnp.float32)
    for kh in range(3):
        for kw in range(3):
            tap = hp[:, kh:kh + H, PW - 1 + kw:PW - 1 + kw + W, :]
            k = kh * 3 + kw
            acc = acc + tap * wdw[k:k + 1, :]
    acc = jnp.clip(acc + bdw_ref[...], 0.0, 6.0)

    # ---- 1x1 projection conv (+ folded BN bias): second MXU matmul ----
    y = jnp.dot(acc.reshape(TB * H * W, C_mid), w2_ref[...],
                preferred_element_type=jnp.float32)
    y = (y + b2_ref[...]).reshape(TB, H, W, C_out)

    if add_residual:                                          # static Python flag
        y = y + x

    o_ref[...] = y.astype(o_ref.dtype)


def _fold_bn(gamma, beta, mean, var, eps=1e-5):
    scale = gamma / jnp.sqrt(var + eps)
    shift = beta - mean * scale
    return scale, shift


def linear_bottleneck_forward(x_nchw, params, *, stride, batch_tile=8):
    """x_nchw: (B, C_in, H, W) f32 (PyTorch layout). Returns NCHW output."""
    B, C_in, H, W = x_nchw.shape
    C_mid = params["conv1_w"].shape[0]
    C_out = params["conv3_w"].shape[0]

    # TODO(synk): BatchNorm uses eval-mode running statistics (folded into the
    # conv weights); training-mode batch statistics are not implemented.
    s1, t1 = _fold_bn(params["bn1_g"], params["bn1_b"], params["bn1_m"], params["bn1_v"])
    s2, t2 = _fold_bn(params["bn2_g"], params["bn2_b"], params["bn2_m"], params["bn2_v"])
    s3, t3 = _fold_bn(params["bn3_g"], params["bn3_b"], params["bn3_m"], params["bn3_v"])

    w1 = (params["conv1_w"][:, :, 0, 0] * s1[:, None]).T                  # (Cin, Cmid)
    b1 = (params["conv1_b"] * s1 + t1)[None, :]                           # (1, Cmid)
    wdw = (jnp.transpose(params["conv2_w"][:, 0, :, :], (1, 2, 0)) * s2   # (3,3,Cmid)
           ).reshape(9, C_mid)                                            # (9, Cmid)
    bdw = (params["conv2_b"] * s2 + t2)[None, :]                          # (1, Cmid)
    w2 = (params["conv3_w"][:, :, 0, 0] * s3[:, None]).T                  # (Cmid, Cout)
    b2 = (params["conv3_b"] * s3 + t3)[None, :]                           # (1, Cout)

    # NHWC: channels on the lane dimension.
    x = jnp.transpose(x_nchw, (0, 2, 3, 1)).astype(jnp.float32)

    add_residual = (stride == 1 and C_in == C_out)

    TB = max(1, min(batch_tile, B))
    n_tiles = pl.cdiv(B, TB)
    B_pad = n_tiles * TB
    if B_pad != B:
        x = jnp.concatenate([x, jnp.zeros((B_pad - B, H, W, C_in), x.dtype)], axis=0)

    flops = 2 * B_pad * H * W * (C_in * C_mid + 9 * C_mid + C_mid * C_out)
    bytes_accessed = 4 * (x.size + w1.size + b1.size + wdw.size + bdw.size
                          + w2.size + b2.size + B_pad * H * W * C_out)

    kernel = functools.partial(_lbn_kernel, add_residual=add_residual)
    out = pl.pallas_call(
        kernel,
        out_shape=jax.ShapeDtypeStruct((B_pad, H, W, C_out), jnp.float32),
        grid=(n_tiles,),
        in_specs=[
            pl.BlockSpec((TB, H, W, C_in), lambda i: (i, 0, 0, 0)),   # streamed
            pl.BlockSpec((C_in, C_mid), lambda i: (0, 0)),            # resident
            pl.BlockSpec((1, C_mid), lambda i: (0, 0)),
            pl.BlockSpec((9, C_mid), lambda i: (0, 0)),
            pl.BlockSpec((1, C_mid), lambda i: (0, 0)),
            pl.BlockSpec((C_mid, C_out), lambda i: (0, 0)),
            pl.BlockSpec((1, C_out), lambda i: (0, 0)),
        ],
        out_specs=pl.BlockSpec((TB, H, W, C_out), lambda i: (i, 0, 0, 0)),
        compiler_params=pltpu.CompilerParams(
            dimension_semantics=("parallel",),   # shards batch across TCs on v7x
            vmem_limit_bytes=48 * 1024 * 1024),
        cost_estimate=pl.CostEstimate(flops=flops, transcendentals=0,
                                      bytes_accessed=bytes_accessed),
    )(x, w1, b1, wdw, bdw, w2, b2)

    out = out[:B]
    if stride > 1:
        # TODO(synk): stride > 1 is computed at full resolution in-kernel and
        # subsampled here (pointwise-equivalent result, ~stride^2 extra work
        # on the depthwise/projection stages only).
        out = out[:, ::stride, ::stride, :]
    return jnp.transpose(out, (0, 3, 1, 2))                    # back to NCHW


# -----------------------------------------------------------------------------
# Pure-JAX reference (eval-mode BN) and parameter init for the self-test.
# -----------------------------------------------------------------------------
def ref_forward(x, p, stride, eps=1e-5):
    def bn(y, g, b, m, v):
        sc = (g / jnp.sqrt(v + eps))[None, :, None, None]
        return (y - m[None, :, None, None]) * sc + b[None, :, None, None]

    dn = ("NCHW", "OIHW", "NCHW")
    hi = lax.Precision.HIGHEST
    c_mid = p["conv1_w"].shape[0]

    y = lax.conv_general_dilated(x, p["conv1_w"], (1, 1), ((0, 0), (0, 0)),
                                 dimension_numbers=dn, precision=hi)
    y = y + p["conv1_b"][None, :, None, None]
    y = jnp.clip(bn(y, p["bn1_g"], p["bn1_b"], p["bn1_m"], p["bn1_v"]), 0.0, 6.0)

    y = lax.conv_general_dilated(y, p["conv2_w"], (stride, stride),
                                 ((1, 1), (1, 1)), dimension_numbers=dn,
                                 feature_group_count=c_mid, precision=hi)
    y = y + p["conv2_b"][None, :, None, None]
    y = jnp.clip(bn(y, p["bn2_g"], p["bn2_b"], p["bn2_m"], p["bn2_v"]), 0.0, 6.0)

    y = lax.conv_general_dilated(y, p["conv3_w"], (1, 1), ((0, 0), (0, 0)),
                                 dimension_numbers=dn, precision=hi)
    y = y + p["conv3_b"][None, :, None, None]
    y = bn(y, p["bn3_g"], p["bn3_b"], p["bn3_m"], p["bn3_v"])

    if stride == 1 and x.shape[1] == y.shape[1]:
        y = y + x
    return y


def init_params(key, in_channels, out_channels, t=6):
    c_mid = in_channels * t
    ks = jax.random.split(key, 18)

    def uni(k, shape, bound):
        return jax.random.uniform(k, shape, jnp.float32, -bound, bound)

    def bn_init(kg, kb, km, kv, c):
        return (jax.random.uniform(kg, (c,), jnp.float32, 0.5, 1.5),
                uni(kb, (c,), 0.2), uni(km, (c,), 0.2),
                jax.random.uniform(kv, (c,), jnp.float32, 0.5, 1.5))

    bd1 = 1.0 / (in_channels ** 0.5)
    bd2 = 1.0 / 3.0
    bd3 = 1.0 / (c_mid ** 0.5)
    g1, be1, m1, v1 = bn_init(ks[2], ks[3], ks[4], ks[5], c_mid)
    g2, be2, m2, v2 = bn_init(ks[8], ks[9], ks[10], ks[11], c_mid)
    g3, be3, m3, v3 = bn_init(ks[14], ks[15], ks[16], ks[17], out_channels)
    return {
        "conv1_w": uni(ks[0], (c_mid, in_channels, 1, 1), bd1),
        "conv1_b": uni(ks[1], (c_mid,), bd1),
        "bn1_g": g1, "bn1_b": be1, "bn1_m": m1, "bn1_v": v1,
        "conv2_w": uni(ks[6], (c_mid, 1, 3, 3), bd2),
        "conv2_b": uni(ks[7], (c_mid,), bd2),
        "bn2_g": g2, "bn2_b": be2, "bn2_m": m2, "bn2_v": v2,
        "conv3_w": uni(ks[12], (out_channels, c_mid, 1, 1), bd3),
        "conv3_b": uni(ks[13], (out_channels,), bd3),
        "bn3_g": g3, "bn3_b": be3, "bn3_m": m3, "bn3_v": v3,
    }


if __name__ == "__main__":
    key = jax.random.PRNGKey(0)
    kx, kp1, kp2 = jax.random.split(key, 3)

    B, C_in, H, W, t = 2, 4, 16, 16, 6
    x = jax.random.normal(kx, (B, C_in, H, W), jnp.float32)

    # Case 1: stride=1, in==out  -> exercises the in-kernel residual add.
    params1 = init_params(kp1, C_in, C_in, t=t)
    out1 = jax.block_until_ready(
        linear_bottleneck_forward(x, params1, stride=1, batch_tile=1))
    ref1 = ref_forward(x, params1, 1)
    assert out1.shape == ref1.shape == (B, C_in, H, W)
    assert jnp.allclose(out1, ref1, atol=1e-3, rtol=1e-3), \
        float(jnp.max(jnp.abs(out1 - ref1)))

    # Case 2: stride=2, in!=out -> strided block, no residual.
    C_out2 = 8
    params2 = init_params(kp2, C_in, C_out2, t=t)
    out2 = jax.block_until_ready(
        linear_bottleneck_forward(x, params2, stride=2, batch_tile=2))
    ref2 = ref_forward(x, params2, 2)
    assert out2.shape == ref2.shape == (B, C_out2, H // 2, W // 2)
    assert jnp.allclose(out2, ref2, atol=1e-3, rtol=1e-3), \
        float(jnp.max(jnp.abs(out2 - ref2)))

    print("KERNEL_OK")
</pallas_src>

<mosaic_0001>
module attributes {stable_mosaic.version = 11 : i64} {
  func.func @_lbn_kernel(%arg0: i32, %arg1: memref<1x16x16x4xf32, #tpu.memory_space<vmem>>, %arg2: memref<4x24xf32, #tpu.memory_space<vmem>>, %arg3: memref<1x24xf32, #tpu.memory_space<vmem>>, %arg4: memref<9x24xf32, #tpu.memory_space<vmem>>, %arg5: memref<1x24xf32, #tpu.memory_space<vmem>>, %arg6: memref<24x4xf32, #tpu.memory_space<vmem>>, %arg7: memref<1x4xf32, #tpu.memory_space<vmem>>, %arg8: memref<1x16x16x4xf32, #tpu.memory_space<vmem>>) attributes {dimension_semantics = [#tpu.dimension_semantics<parallel>], iteration_bounds = array<i64: 2>, scalar_prefetch = 0 : i64, scratch_operands = 0 : i64, tpu.core_type = #tpu.core_type<tc>, window_params = [{transform_indices = @transform_0, window_bounds = array<i64: 1, 16, 16, 4>}, {pipeline_mode = #tpu.pipeline_mode<synchronous>, transform_indices = @transform_1, window_bounds = array<i64: 4, 24>}, {pipeline_mode = #tpu.pipeline_mode<synchronous>, transform_indices = @transform_2, window_bounds = array<i64: 1, 24>}, {pipeline_mode = #tpu.pipeline_mode<synchronous>, transform_indices = @transform_3, window_bounds = array<i64: 9, 24>}, {pipeline_mode = #tpu.pipeline_mode<synchronous>, transform_indices = @transform_4, window_bounds = array<i64: 1, 24>}, {pipeline_mode = #tpu.pipeline_mode<synchronous>, transform_indices = @transform_5, window_bounds = array<i64: 24, 4>}, {pipeline_mode = #tpu.pipeline_mode<synchronous>, transform_indices = @transform_6, window_bounds = array<i64: 1, 4>}, {transform_indices = @transform_7, window_bounds = array<i64: 1, 16, 16, 4>}]} {
    %c0 = arith.constant 0 : index
    %c0_0 = arith.constant 0 : index
    %c0_1 = arith.constant 0 : index
    %c0_2 = arith.constant 0 : index
    %0 = vector.load %arg1[%c0, %c0_0, %c0_1, %c0_2] : memref<1x16x16x4xf32, #tpu.memory_space<vmem>>, vector<1x16x16x4xf32>
    %1 = vector.shape_cast %0 : vector<1x16x16x4xf32> to vector<256x4xf32>
    %c0_3 = arith.constant 0 : index
    %c0_4 = arith.constant 0 : index
    %2 = vector.load %arg2[%c0_3, %c0_4] : memref<4x24xf32, #tpu.memory_space<vmem>>, vector<4x24xf32>
    %cst = arith.constant dense<0.000000e+00> : vector<256x24xf32>
    %3 = tpu.matmul %1, %2, %cst {dimension_numbers = #tpu.dot_dimension_numbers<[1], [0], [0], [1], [0, 0, 1, 1], [], []>} : vector<256x4xf32>, vector<4x24xf32>, vector<256x24xf32> -> vector<256x24xf32>
    %c0_5 = arith.constant 0 : index
    %c0_6 = arith.constant 0 : index
    %4 = vector.load %arg3[%c0_5, %c0_6] : memref<1x24xf32, #tpu.memory_space<vmem>>, vector<1x24xf32>
    %5 = vector.broadcast %4 : vector<1x24xf32> to vector<256x24xf32>
    %6 = arith.addf %3, %5 : vector<256x24xf32>
    %cst_7 = arith.constant 0.000000e+00 : f32
    %cst_8 = arith.constant 6.000000e+00 : f32
    %7 = vector.broadcast %cst_7 : f32 to vector<256x24xf32>
    %8 = arith.maximumf %7, %6 : vector<256x24xf32>
    %9 = vector.broadcast %cst_8 : f32 to vector<256x24xf32>
    %10 = arith.minimumf %9, %8 : vector<256x24xf32>
    %11 = vector.shape_cast %10 : vector<256x24xf32> to vector<1x16x16x24xf32>
    %cst_9 = arith.constant 0.000000e+00 : f32
    %12 = vector.broadcast %cst_9 : f32 to vector<1x16x8x24xf32>
    %13 = tpu.concatenate %12, %11, %12 in 2 : vector<1x16x8x24xf32>, vector<1x16x16x24xf32>, vector<1x16x8x24xf32> -> vector<1x16x32x24xf32>
    %cst_10 = arith.constant 0.000000e+00 : f32
    %14 = vector.broadcast %cst_10 : f32 to vector<1x1x32x24xf32>
    %15 = tpu.concatenate %14, %13, %14 in 1 : vector<1x1x32x24xf32>, vector<1x16x32x24xf32>, vector<1x1x32x24xf32> -> vector<1x18x32x24xf32>
    %c0_11 = arith.constant 0 : index
    %c0_12 = arith.constant 0 : index
    %16 = vector.load %arg4[%c0_11, %c0_12] : memref<9x24xf32, #tpu.memory_space<vmem>>, vector<9x24xf32>
    %cst_13 = arith.constant 0.000000e+00 : f32
    %17 = vector.broadcast %cst_13 : f32 to vector<1x16x16x24xf32>
    %18 = vector.extract_strided_slice %15 {offsets = [0, 0, 7, 0], sizes = [1, 16, 16, 24], strides = [1, 1, 1, 1]} : vector<1x18x32x24xf32> to vector<1x16x16x24xf32>
    %19 = vector.extract_strided_slice %16 {offsets = [0, 0], sizes = [1, 24], strides = [1, 1]} : vector<9x24xf32> to vector<1x24xf32>
    %20 = vector.shape_cast %19 : vector<1x24xf32> to vector<1x1x1x24xf32>
    %21 = vector.broadcast %20 : vector<1x1x1x24xf32> to vector<1x16x16x24xf32>
    %22 = arith.mulf %18, %21 : vector<1x16x16x24xf32>
    %23 = arith.addf %17, %22 : vector<1x16x16x24xf32>
    %24 = vector.extract_strided_slice %15 {offsets = [0, 0, 8, 0], sizes = [1, 16, 16, 24], strides = [1, 1, 1, 1]} : vector<1x18x32x24xf32> to vector<1x16x16x24xf32>
    %25 = vector.extract_strided_slice %16 {offsets = [1, 0], sizes = [1, 24], strides = [1, 1]} : vector<9x24xf32> to vector<1x24xf32>
    %26 = vector.shape_cast %25 : vector<1x24xf32> to vector<1x1x1x24xf32>
    %27 = vector.broadcast %26 : vector<1x1x1x24xf32> to vector<1x16x16x24xf32>
    %28 = arith.mulf %24, %27 : vector<1x16x16x24xf32>
    %29 = arith.addf %23, %28 : vector<1x16x16x24xf32>
    %30 = vector.extract_strided_slice %15 {offsets = [0, 0, 9, 0], sizes = [1, 16, 16, 24], strides = [1, 1, 1, 1]} : vector<1x18x32x24xf32> to vector<1x16x16x24xf32>
    %31 = vector.extract_strided_slice %16 {offsets = [2, 0], sizes = [1, 24], strides = [1, 1]} : vector<9x24xf32> to vector<1x24xf32>
    %32 = vector.shape_cast %31 : vector<1x24xf32> to vector<1x1x1x24xf32>
    %33 = vector.broadcast %32 : vector<1x1x1x24xf32> to vector<1x16x16x24xf32>
    %34 = arith.mulf %30, %33 : vector<1x16x16x24xf32>
    %35 = arith.addf %29, %34 : vector<1x16x16x24xf32>
    %36 = vector.extract_strided_slice %15 {offsets = [0, 1, 7, 0], sizes = [1, 16, 16, 24], strides = [1, 1, 1, 1]} : vector<1x18x32x24xf32> to vector<1x16x16x24xf32>
    %37 = vector.extract_strided_slice %16 {offsets = [3, 0], sizes = [1, 24], strides = [1, 1]} : vector<9x24xf32> to vector<1x24xf32>
    %38 = vector.shape_cast %37 : vector<1x24xf32> to vector<1x1x1x24xf32>
    %39 = vector.broadcast %38 : vector<1x1x1x24xf32> to vector<1x16x16x24xf32>
    %40 = arith.mulf %36, %39 : vector<1x16x16x24xf32>
    %41 = arith.addf %35, %40 : vector<1x16x16x24xf32>
    %42 = vector.extract_strided_slice %15 {offsets = [0, 1, 8, 0], sizes = [1, 16, 16, 24], strides = [1, 1, 1, 1]} : vector<1x18x32x24xf32> to vector<1x16x16x24xf32>
    %43 = vector.extract_strided_slice %16 {offsets = [4, 0], sizes = [1, 24], strides = [1, 1]} : vector<9x24xf32> to vector<1x24xf32>
    %44 = vector.shape_cast %43 : vector<1x24xf32> to vector<1x1x1x24xf32>
    %45 = vector.broadcast %44 : vector<1x1x1x24xf32> to vector<1x16x16x24xf32>
    %46 = arith.mulf %42, %45 : vector<1x16x16x24xf32>
    %47 = arith.addf %41, %46 : vector<1x16x16x24xf32>
    %48 = vector.extract_strided_slice %15 {offsets = [0, 1, 9, 0], sizes = [1, 16, 16, 24], strides = [1, 1, 1, 1]} : vector<1x18x32x24xf32> to vector<1x16x16x24xf32>
    %49 = vector.extract_strided_slice %16 {offsets = [5, 0], sizes = [1, 24], strides = [1, 1]} : vector<9x24xf32> to vector<1x24xf32>
    %50 = vector.shape_cast %49 : vector<1x24xf32> to vector<1x1x1x24xf32>
    %51 = vector.broadcast %50 : vector<1x1x1x24xf32> to vector<1x16x16x24xf32>
    %52 = arith.mulf %48, %51 : vector<1x16x16x24xf32>
    %53 = arith.addf %47, %52 : vector<1x16x16x24xf32>
    %54 = vector.extract_strided_slice %15 {offsets = [0, 2, 7, 0], sizes = [1, 16, 16, 24], strides = [1, 1, 1, 1]} : vector<1x18x32x24xf32> to vector<1x16x16x24xf32>
    %55 = vector.extract_strided_slice %16 {offsets = [6, 0], sizes = [1, 24], strides = [1, 1]} : vector<9x24xf32> to vector<1x24xf32>
    %56 = vector.shape_cast %55 : vector<1x24xf32> to vector<1x1x1x24xf32>
    %57 = vector.broadcast %56 : vector<1x1x1x24xf32> to vector<1x16x16x24xf32>
    %58 = arith.mulf %54, %57 : vector<1x16x16x24xf32>
    %59 = arith.addf %53, %58 : vector<1x16x16x24xf32>
    %60 = vector.extract_strided_slice %15 {offsets = [0, 2, 8, 0], sizes = [1, 16, 16, 24], strides = [1, 1, 1, 1]} : vector<1x18x32x24xf32> to vector<1x16x16x24xf32>
    %61 = vector.extract_strided_slice %16 {offsets = [7, 0], sizes = [1, 24], strides = [1, 1]} : vector<9x24xf32> to vector<1x24xf32>
    %62 = vector.shape_cast %61 : vector<1x24xf32> to vector<1x1x1x24xf32>
    %63 = vector.broadcast %62 : vector<1x1x1x24xf32> to vector<1x16x16x24xf32>
    %64 = arith.mulf %60, %63 : vector<1x16x16x24xf32>
    %65 = arith.addf %59, %64 : vector<1x16x16x24xf32>
    %66 = vector.extract_strided_slice %15 {offsets = [0, 2, 9, 0], sizes = [1, 16, 16, 24], strides = [1, 1, 1, 1]} : vector<1x18x32x24xf32> to vector<1x16x16x24xf32>
    %67 = vector.extract_strided_slice %16 {offsets = [8, 0], sizes = [1, 24], strides = [1, 1]} : vector<9x24xf32> to vector<1x24xf32>
    %68 = vector.shape_cast %67 : vector<1x24xf32> to vector<1x1x1x24xf32>
    %69 = vector.broadcast %68 : vector<1x1x1x24xf32> to vector<1x16x16x24xf32>
    %70 = arith.mulf %66, %69 : vector<1x16x16x24xf32>
    %71 = arith.addf %65, %70 : vector<1x16x16x24xf32>
    %c0_14 = arith.constant 0 : index
    %c0_15 = arith.constant 0 : index
    %72 = vector.load %arg5[%c0_14, %c0_15] : memref<1x24xf32, #tpu.memory_space<vmem>>, vector<1x24xf32>
    %73 = vector.shape_cast %72 : vector<1x24xf32> to vector<1x1x1x24xf32>
    %74 = vector.broadcast %73 : vector<1x1x1x24xf32> to vector<1x16x16x24xf32>
    %75 = arith.addf %71, %74 : vector<1x16x16x24xf32>
    %cst_16 = arith.constant 0.000000e+00 : f32
    %cst_17 = arith.constant 6.000000e+00 : f32
    %76 = vector.broadcast %cst_16 : f32 to vector<1x16x16x24xf32>
    %77 = arith.maximumf %76, %75 : vector<1x16x16x24xf32>
    %78 = vector.broadcast %cst_17 : f32 to vector<1x16x16x24xf32>
    %79 = arith.minimumf %78, %77 : vector<1x16x16x24xf32>
    %80 = vector.shape_cast %79 : vector<1x16x16x24xf32> to vector<256x24xf32>
    %c0_18 = arith.constant 0 : index
    %c0_19 = arith.constant 0 : index
    %81 = vector.load %arg6[%c0_18, %c0_19] : memref<24x4xf32, #tpu.memory_space<vmem>>, vector<24x4xf32>
    %cst_20 = arith.constant dense<0.000000e+00> : vector<256x4xf32>
    %82 = tpu.matmul %80, %81, %cst_20 {dimension_numbers = #tpu.dot_dimension_numbers<[1], [0], [0], [1], [0, 0, 1, 1], [], []>} : vector<256x24xf32>, vector<24x4xf32>, vector<256x4xf32> -> vector<256x4xf32>
    %c0_21 = arith.constant 0 : index
    %c0_22 = arith.constant 0 : index
    %83 = vector.load %arg7[%c0_21, %c0_22] : memref<1x4xf32, #tpu.memory_space<vmem>>, vector<1x4xf32>
    %84 = vector.broadcast %83 : vector<1x4xf32> to vector<256x4xf32>
    %85 = arith.addf %82, %84 : vector<256x4xf32>
    %86 = vector.shape_cast %85 : vector<256x4xf32> to vector<1x16x16x4xf32>
    %87 = arith.addf %86, %0 : vector<1x16x16x4xf32>
    %c0_23 = arith.constant 0 : index
    %c0_24 = arith.constant 0 : index
    %c0_25 = arith.constant 0 : index
    %c0_26 = arith.constant 0 : index
    %88 = vector.load %arg8[%c0_23, %c0_24, %c0_25, %c0_26] : memref<1x16x16x4xf32, #tpu.memory_space<vmem>>, vector<1x16x16x4xf32>
    tpu.vector_store %arg8[%c0_23, %c0_24, %c0_25, %c0_26], %87 {strides = array<i32>} : memref<1x16x16x4xf32, #tpu.memory_space<vmem>>, vector<1x16x16x4xf32>,
    return
  }
  func.func @transform_0(%arg0: i32) -> (i32, i32, i32, i32) {
    %c0_i32 = arith.constant 0 : i32
    %c0_i32_0 = arith.constant 0 : i32
    %c0_i32_1 = arith.constant 0 : i32
    %c0_i32_2 = arith.constant 0 : i32
    return %arg0, %c0_i32, %c0_i32_0, %c0_i32_1 : i32, i32, i32, i32
  }
  func.func @transform_1(%arg0: i32) -> (i32, i32) {
    %c0_i32 = arith.constant 0 : i32
    %c0_i32_0 = arith.constant 0 : i32
    %c0_i32_1 = arith.constant 0 : i32
    return %c0_i32, %c0_i32_0 : i32, i32
  }
  func.func @transform_2(%arg0: i32) -> (i32, i32) {
    %c0_i32 = arith.constant 0 : i32
    %c0_i32_0 = arith.constant 0 : i32
    %c0_i32_1 = arith.constant 0 : i32
    return %c0_i32, %c0_i32_0 : i32, i32
  }
  func.func @transform_3(%arg0: i32) -> (i32, i32) {
    %c0_i32 = arith.constant 0 : i32
    %c0_i32_0 = arith.constant 0 : i32
    %c0_i32_1 = arith.constant 0 : i32
    return %c0_i32, %c0_i32_0 : i32, i32
  }
  func.func @transform_4(%arg0: i32) -> (i32, i32) {
    %c0_i32 = arith.constant 0 : i32
    %c0_i32_0 = arith.constant 0 : i32
    %c0_i32_1 = arith.constant 0 : i32
    return %c0_i32, %c0_i32_0 : i32, i32
  }
  func.func @transform_5(%arg0: i32) -> (i32, i32) {
    %c0_i32 = arith.constant 0 : i32
    %c0_i32_0 = arith.constant 0 : i32
    %c0_i32_1 = arith.constant 0 : i32
    return %c0_i32, %c0_i32_0 : i32, i32
  }
  func.func @transform_6(%arg0: i32) -> (i32, i32) {
    %c0_i32 = arith.constant 0 : i32
    %c0_i32_0 = arith.constant 0 : i32
    %c0_i32_1 = arith.constant 0 : i32
    return %c0_i32, %c0_i32_0 : i32, i32
  }
  func.func @transform_7(%arg0: i32) -> (i32, i32, i32, i32) {
    %c0_i32 = arith.constant 0 : i32
    %c0_i32_0 = arith.constant 0 : i32
    %c0_i32_1 = arith.constant 0 : i32
    %c0_i32_2 = arith.constant 0 : i32
    return %arg0, %c0_i32, %c0_i32_0, %c0_i32_1 : i32, i32, i32, i32
  }
}

</mosaic_0001>

<llo_original>
// kernel: tpu_custom_call.1
$region0: #{tpu_custom_call.1}
  #allocation0 [shape = 'u32[]', space=smem, size = 0x4, offset = 0x4, fixed_abs, tag = 'smem constant byte address 0x4 - core index']
  #allocation1 [shape = 'u32[144,128]{1,0:T(1,128)}', space=vmem, size = 0x12000, scoped, tag = 'internal scratch']
  %s0 = inlined_call_operand.vmem [shape: f32[2,16,16,4], index: 0, kind: input, shape index: {}]
  %s1 = inlined_call_operand.vmem [shape: f32[4,24], index: 1, kind: input, shape index: {}]
  %s2 = inlined_call_operand.vmem [shape: f32[1,24], index: 2, kind: input, shape index: {}]
  %s3 = inlined_call_operand.vmem [shape: f32[9,24], index: 3, kind: input, shape index: {}]
  %s4 = inlined_call_operand.vmem [shape: f32[1,24], index: 4, kind: input, shape index: {}]
  %s5 = inlined_call_operand.vmem [shape: f32[24,4], index: 5, kind: input, shape index: {}]
  %s6 = inlined_call_operand.vmem [shape: f32[1,4], index: 6, kind: input, shape index: {}]
  %s7 = inlined_call_operand.vmem [shape: f32[2,16,16,4], index: 7, kind: output, shape index: {}]
  %s8 = sld [smem:[#allocation0]]
  $region61: #{tpu_custom_call.1} parent=0
    _
  %s10 = ssub.s32 1, %s8
  %s11 = scalar_select 0, %s10, %s8
  loop: start=0, step=1, limit=4
  $region2: #{tpu_custom_call.1} parent=0 // loop_pre_header
    _
  $region3: #{tpu_custom_call.1} parent=0 // loop_header
    %s13 = sphi 0, %s17
    %p14 = scmp.ge.s32.totalorder %s13, 4
    %s23 = sphi 0, %s25
    %s26 = sphi 0, %s23
    %s27 = sphi 0, %s26
    %s43 = sphi 0, %s27
    %s47 = sphi 0, %s47
    %s49 = sphi 0, %s47
    %s50 = sphi 0, %s49
    %s64 = sphi 0, %s50
    %s68 = sphi 0, %s68
    %s70 = sphi 0, %s68
    %s71 = sphi 0, %s70
    %s85 = sphi 0, %s71
    %s89 = sphi 0, %s89
    %s91 = sphi 0, %s89
    %s92 = sphi 0, %s91
    %s106 = sphi 0, %s92
    %s110 = sphi 0, %s110
    %s112 = sphi 0, %s110
    %s113 = sphi 0, %s112
    %s127 = sphi 0, %s113
    %s131 = sphi 0, %s131
    %s133 = sphi 0, %s131
    %s134 = sphi 0, %s133
    %s148 = sphi 0, %s134
    %s152 = sphi 0, %s152
    %s154 = sphi 0, %s152
    %s155 = sphi 0, %s154
    %s169 = sphi 0, %s155
    %s175 = sphi 0, %s177
    %s178 = sphi 0, %s175
    %s179 = sphi 0, %s178
    %s195 = sphi 0, %s179
  $region4: #{tpu_custom_call.1} parent=0 // loop_header_branch
    %16 = sbr.rel (%p14) target = $region8
  $region5: #{tpu_custom_call.1} parent=0 // loop_body
    %s18 = ssub.s32 %s13, 1
    %s19 = ssub.s32 %s13, 2
    %s20 = sadd.s32 %s13, 1
    %s21 = ssub.s32 %s13, %s20
    %p22 = scmp.eq.s32.totalorder %s21, 0
    %s24 = sadd.s32 %s23, 1
    %s25 = scalar_select %p22, %s23, %s24
    %p28 = pneg %p22
    %p29 = scmp.eq.s32.totalorder %s13, 1
    %p30 = por %p28, %p29
    %p31 = scmp.ne.s32.totalorder %s23, %s26
    %p32 = scmp.eq.s32.totalorder %s13, 0
    %p33 = por %p31, %p32
    %p34 = scmp.ne.s32.totalorder %s23, %s26
    %p35 = scmp.eq.s32.totalorder %s18, 1
    %p36 = por %p34, %p35
    %p37 = scmp.ne.s32.totalorder %s26, %s27
    %p38 = scmp.eq.s32.totalorder %s18, 0
    %p39 = por %p37, %p38
    %p40 = scmp.ne.s32.totalorder %s26, %s27
    %p41 = scmp.eq.s32.totalorder %s19, 1
    %p42 = por %p40, %p41
    %p44 = scmp.ne.s32.totalorder %s27, %s43
    %p45 = scmp.eq.s32.totalorder %s19, 0
    %p46 = por %p44, %p45
    %s48 = sadd.s32 %s47, 1
    %p51 = scmp.eq.s32.totalorder %s13, 1
    %p52 = scmp.ne.s32.totalorder %s47, %s49
    %p53 = scmp.eq.s32.totalorder %s13, 0
    %p54 = por %p52, %p53
    %p55 = scmp.ne.s32.totalorder %s47, %s49
    %p56 = scmp.eq.s32.totalorder %s18, 1
    %p57 = por %p55, %p56
    %p58 = scmp.ne.s32.totalorder %s49, %s50
    %p59 = scmp.eq.s32.totalorder %s18, 0
    %p60 = por %p58, %p59
    %p61 = scmp.ne.s32.totalorder %s49, %s50
    %p62 = scmp.eq.s32.totalorder %s19, 1
    %p63 = por %p61, %p62
    %p65 = scmp.ne.s32.totalorder %s50, %s64
    %p66 = scmp.eq.s32.totalorder %s19, 0
    %p67 = por %p65, %p66
    %s69 = sadd.s32 %s68, 1
    %p72 = scmp.eq.s32.totalorder %s13, 1
    %p73 = scmp.ne.s32.totalorder %s68, %s70
    %p74 = scmp.eq.s32.totalorder %s13, 0
    %p75 = por %p73, %p74
    %p76 = scmp.ne.s32.totalorder %s68, %s70
    %p77 = scmp.eq.s32.totalorder %s18, 1
    %p78 = por %p76, %p77
    %p79 = scmp.ne.s32.totalorder %s70, %s71
    %p80 = scmp.eq.s32.totalorder %s18, 0
    %p81 = por %p79, %p80
    %p82 = scmp.ne.s32.totalorder %s70, %s71
    %p83 = scmp.eq.s32.totalorder %s19, 1
    %p84 = por %p82, %p83
    %p86 = scmp.ne.s32.totalorder %s71, %s85
    %p87 = scmp.eq.s32.totalorder %s19, 0
    %p88 = por %p86, %p87
    %s90 = sadd.s32 %s89, 1
    %p93 = scmp.eq.s32.totalorder %s13, 1
    %p94 = scmp.ne.s32.totalorder %s89, %s91
    %p95 = scmp.eq.s32.totalorder %s13, 0
    %p96 = por %p94, %p95
    %p97 = scmp.ne.s32.totalorder %s89, %s91
    %p98 = scmp.eq.s32.totalorder %s18, 1
    %p99 = por %p97, %p98
    %p100 = scmp.ne.s32.totalorder %s91, %s92
    %p101 = scmp.eq.s32.totalorder %s18, 0
    %p102 = por %p100, %p101
    %p103 = scmp.ne.s32.totalorder %s91, %s92
    %p104 = scmp.eq.s32.totalorder %s19, 1
    %p105 = por %p103, %p104
    %p107 = scmp.ne.s32.totalorder %s92, %s106
    %p108 = scmp.eq.s32.totalorder %s19, 0
    %p109 = por %p107, %p108
    %s111 = sadd.s32 %s110, 1
    %p114 = scmp.eq.s32.totalorder %s13, 1
    %p115 = scmp.ne.s32.totalorder %s110, %s112
    %p116 = scmp.eq.s32.totalorder %s13, 0
    %p117 = por %p115, %p116
    %p118 = scmp.ne.s32.totalorder %s110, %s112
    %p119 = scmp.eq.s32.totalorder %s18, 1
    %p120 = por %p118, %p119
    %p121 = scmp.ne.s32.totalorder %s112, %s113
    %p122 = scmp.eq.s32.totalorder %s18, 0
    %p123 = por %p121, %p122
    %p124 = scmp.ne.s32.totalorder %s112, %s113
    %p125 = scmp.eq.s32.totalorder %s19, 1
    %p126 = por %p124, %p125
    %p128 = scmp.ne.s32.totalorder %s113, %s127
    %p129 = scmp.eq.s32.totalorder %s19, 0
    %p130 = por %p128, %p129
    %s132 = sadd.s32 %s131, 1
    %p135 = scmp.eq.s32.totalorder %s13, 1
    %p136 = scmp.ne.s32.totalorder %s131, %s133
    %p137 = scmp.eq.s32.totalorder %s13, 0
    %p138 = por %p136, %p137
    %p139 = scmp.ne.s32.totalorder %s131, %s133
    %p140 = scmp.eq.s32.totalorder %s18, 1
    %p141 = por %p139, %p140
    %p142 = scmp.ne.s32.totalorder %s133, %s134
    %p143 = scmp.eq.s32.totalorder %s18, 0
    %p144 = por %p142, %p143
    %p145 = scmp.ne.s32.totalorder %s133, %s134
    %p146 = scmp.eq.s32.totalorder %s19, 1
    %p147 = por %p145, %p146
    %p149 = scmp.ne.s32.totalorder %s134, %s148
    %p150 = scmp.eq.s32.totalorder %s19, 0
    %p151 = por %p149, %p150
    %s153 = sadd.s32 %s152, 1
    %p156 = scmp.eq.s32.totalorder %s13, 1
    %p157 = scmp.ne.s32.totalorder %s152, %s154
    %p158 = scmp.eq.s32.totalorder %s13, 0
    %p159 = por %p157, %p158
    %p160 = scmp.ne.s32.totalorder %s152, %s154
    %p161 = scmp.eq.s32.totalorder %s18, 1
    %p162 = por %p160, %p161
    %p163 = scmp.ne.s32.totalorder %s154, %s155
    %p164 = scmp.eq.s32.totalorder %s18, 0
    %p165 = por %p163, %p164
    %p166 = scmp.ne.s32.totalorder %s154, %s155
    %p167 = scmp.eq.s32.totalorder %s19, 1
    %p168 = por %p166, %p167
    %p170 = scmp.ne.s32.totalorder %s155, %s169
    %p171 = scmp.eq.s32.totalorder %s19, 0
    %p172 = por %p170, %p171
    %s173 = ssub.s32 %s13, %s20
    %p174 = scmp.eq.s32.totalorder %s173, 0
    %s176 = sadd.s32 %s175, 1
    %s177 = scalar_select %p174, %s175, %s176
    %p180 = pneg %p174
    %p181 = scmp.eq.s32.totalorder %s13, 1
    %p182 = por %p180, %p181
    %p183 = scmp.ne.s32.totalorder %s175, %s178
    %p184 = scmp.eq.s32.totalorder %s13, 0
    %p185 = por %p183, %p184
    %p186 = scmp.ne.s32.totalorder %s175, %s178
    %p187 = scmp.eq.s32.totalorder %s18, 1
    %p188 = por %p186, %p187
    %p189 = scmp.ne.s32.totalorder %s178, %s179
    %p190 = scmp.eq.s32.totalorder %s18, 0
    %p191 = por %p189, %p190
    %p192 = scmp.ne.s32.totalorder %s178, %s179
    %p193 = scmp.eq.s32.totalorder %s19, 1
    %p194 = por %p192, %p193
    %p196 = scmp.ne.s32.totalorder %s179, %s195
    %p197 = scmp.eq.s32.totalorder %s19, 0
    %p198 = por %p196, %p197
    %p199 = scmp.le.s32.totalorder 1, %s13
    %p200 = scmp.lt.s32.totalorder %s13, 3
    %p201 = pnand %p199, %p200
    %p202 = pneg %p201
    // Predicated region
    $region9: #{tpu_custom_call.1} parent=5 // pred_check
      _
    $region10: #{tpu_custom_call.1} parent=5 // pred_check_branch
      %204 = sbr.rel (%p201) target = $region12
    $region11: #{tpu_custom_call.1} parent=5 // pred_region
      %s205 = ssub.s32 %s13, 1
      // Predicated region
      $region13: #{tpu_custom_call.1} parent=11 // pred_check
        %p206 = pneg %p60
      $region14: #{tpu_custom_call.1} parent=11 // pred_check_branch
        %208 = sbr.rel (%p206) target = $region16
      $region15: #{tpu_custom_call.1} parent=11 // pred_region
        _
      $region16: #{tpu_custom_call.1} parent=11 // pred_fallthru
        _
      // Predicated region
      $region17: #{tpu_custom_call.1} parent=11 // pred_check
        %p209 = pneg %p81
      $region18: #{tpu_custom_call.1} parent=11 // pred_check_branch
        %211 = sbr.rel (%p209) target = $region20
      $region19: #{tpu_custom_call.1} parent=11 // pred_region
        _
      $region20: #{tpu_custom_call.1} parent=11 // pred_fallthru
        _
      // Predicated region
      $region21: #{tpu_custom_call.1} parent=11 // pred_check
        %p212 = pneg %p102
      $region22: #{tpu_custom_call.1} parent=11 // pred_check_branch
        %214 = sbr.rel (%p212) target = $region24
      $region23: #{tpu_custom_call.1} parent=11 // pred_region
        _
      $region24: #{tpu_custom_call.1} parent=11 // pred_fallthru
        _
      // Predicated region
      $region25: #{tpu_custom_call.1} parent=11 // pred_check
        %p215 = pneg %p123
      $region26: #{tpu_custom_call.1} parent=11 // pred_check_branch
        %217 = sbr.rel (%p215) target = $region28
      $region27: #{tpu_custom_call.1} parent=11 // pred_region
        _
      $region28: #{tpu_custom_call.1} parent=11 // pred_fallthru
        _
      // Predicated region
      $region29: #{tpu_custom_call.1} parent=11 // pred_check
        %p218 = pneg %p144
      $region30: #{tpu_custom_call.1} parent=11 // pred_check_branch
        %220 = sbr.rel (%p218) target = $region32
      $region31: #{tpu_custom_call.1} parent=11 // pred_region
        _
      $region32: #{tpu_custom_call.1} parent=11 // pred_fallthru
        _
      // Predicated region
      $region33: #{tpu_custom_call.1} parent=11 // pred_check
        %p221 = pneg %p165
      $region34: #{tpu_custom_call.1} parent=11 // pred_check_branch
        %223 = sbr.rel (%p221) target = $region36
      $region35: #{tpu_custom_call.1} parent=11 // pred_region
        _
      $region36: #{tpu_custom_call.1} parent=11 // pred_fallthru
        _
    $region12: #{tpu_custom_call.1} parent=5 // pred_fallthru
      _
    %p224 = scmp.lt.s32.totalorder %s13, 2
    // Predicated region
    $region37: #{tpu_custom_call.1} parent=5 // pred_check
      %p225 = pneg %p224
    $region38: #{tpu_custom_call.1} parent=5 // pred_check_branch
      %227 = sbr.rel (%p225) target = $region40
    $region39: #{tpu_custom_call.1} parent=5 // pred_region
      // Predicated region
      $region41: #{tpu_custom_call.1} parent=39 // pred_check
        %p228 = pneg %p33
      $region42: #{tpu_custom_call.1} parent=39 // pred_check_branch
        %230 = sbr.rel (%p228) target = $region44
      $region43: #{tpu_custom_call.1} parent=39 // pred_region
        %p231 = scmp.lt.s32.totalorder %s13, 1
        %s232 = scalar_select %p231, %s13, 1
        %s233 = smul.addr %s232, 32
        %s234 = smul.addr %s233, 8
        %s235 = scalar_lea.vmem %s0, %s234
      $region44: #{tpu_custom_call.1} parent=39 // pred_fallthru
        _
    $region40: #{tpu_custom_call.1} parent=5 // pred_fallthru
      _
    %p236 = scmp.le.s32.totalorder 1, %s13
    %p237 = scmp.lt.s32.totalorder %s13, 3
    %p238 = pnand %p236, %p237
    %p239 = pneg %p238
    // Predicated region
    $region45: #{tpu_custom_call.1} parent=5 // pred_check
      _
    $region46: #{tpu_custom_call.1} parent=5 // pred_check_branch
      %241 = sbr.rel (%p238) target = $region48
    $region47: #{tpu_custom_call.1} parent=5 // pred_region
      %s242 = ssub.s32 %s13, 1
      %p243 = scmp.lt.s32.totalorder %s18, 1
      %s244 = scalar_select %p243, %s18, 1
      %s245 = smul.addr %s244, 32
      %s246 = smul.addr %s245, 8
      %s247 = scalar_lea.vmem %s0, %s246
      %p248 = pneg %p39
      %p249 = pneg %p36
      %p250 = pneg %p60
      %p251 = pneg %p57
      %p252 = pneg %p81
      %p253 = pneg %p78
      %p254 = pneg %p102
      %p255 = pneg %p99
      %p256 = pneg %p123
      %p257 = pneg %p120
      %p258 = pneg %p144
      %p259 = pneg %p141
      %p260 = pneg %p165
      %p261 = pneg %p162
      %p262 = pneg %p191
      %p263 = pneg %p188
      %p264 = scmp.lt.s32.totalorder %s18, 1
      %s265 = scalar_select %p264, %s18, 1
      %s266 = smul.addr %s265, 32
      %s267 = smul.addr %s266, 8
      %s268 = scalar_lea.vmem %s7, %s267
      %p269 = scmp.lt.s32.totalorder %s18, 1
      %s270 = scalar_select %p269, %s18, 1
      %s271 = smul.addr %s270, 32
      %s272 = smul.addr %s271, 8
      %s273 = scalar_lea.vmem %s0, %s272
      %p274 = scmp.lt.s32.totalorder %s18, 1
      %s275 = scalar_select %p274, %s18, 1
      %s276 = smul.addr %s275, 32
      %s277 = smul.addr %s276, 8
      %s278 = scalar_lea.vmem %s7, %s277
      %v279 = vld [vmem:[%s273] sm:$0xff]
      %v280 = vld [vmem:[%s273 + $0x8] sm:$0xff]
      %v281 = vld [vmem:[%s273 + $0x10] sm:$0xff]
      %v282 = vld [vmem:[%s273 + $0x18] sm:$0xff]
      %v283 = vld [vmem:[%s273 + $0x20] sm:$0xff]
      %v284 = vld [vmem:[%s273 + $0x28] sm:$0xff]
      %v285 = vld [vmem:[%s273 + $0x30] sm:$0xff]
      %v286 = vld [vmem:[%s273 + $0x38] sm:$0xff]
      %v287 = vld [vmem:[%s273 + $0x40] sm:$0xff]
      %v288 = vld [vmem:[%s273 + $0x48] sm:$0xff]
      %v289 = vld [vmem:[%s273 + $0x50] sm:$0xff]
      %v290 = vld [vmem:[%s273 + $0x58] sm:$0xff]
      %v291 = vld [vmem:[%s273 + $0x60] sm:$0xff]
      %v292 = vld [vmem:[%s273 + $0x68] sm:$0xff]
      %v293 = vld [vmem:[%s273 + $0x70] sm:$0xff]
      %v294 = vld [vmem:[%s273 + $0x78] sm:$0xff]
      %v295 = vld [vmem:[%s273 + $0x80] sm:$0xff]
      %v296 = vld [vmem:[%s273 + $0x88] sm:$0xff]
      %v297 = vld [vmem:[%s273 + $0x90] sm:$0xff]
      %v298 = vld [vmem:[%s273 + $0x98] sm:$0xff]
      %v299 = vld [vmem:[%s273 + $0xa0] sm:$0xff]
      %v300 = vld [vmem:[%s273 + $0xa8] sm:$0xff]
      %v301 = vld [vmem:[%s273 + $0xb0] sm:$0xff]
      %v302 = vld [vmem:[%s273 + $0xb8] sm:$0xff]
      %v303 = vld [vmem:[%s273 + $0xc0] sm:$0xff]
      %v304 = vld [vmem:[%s273 + $0xc8] sm:$0xff]
      %v305 = vld [vmem:[%s273 + $0xd0] sm:$0xff]
      %v306 = vld [vmem:[%s273 + $0xd8] sm:$0xff]
      %v307 = vld [vmem:[%s273 + $0xe0] sm:$0xff]
      %v308 = vld [vmem:[%s273 + $0xe8] sm:$0xff]
      %v309 = vld [vmem:[%s273 + $0xf0] sm:$0xff]
      %v310 = vld [vmem:[%s273 + $0xf8] sm:$0xff]
      %v311 = vld [vmem:[%s1] sm:$0xf]
      %v312 = vld [vmem:[%s2] sm:$0x1]
      %v314 = vlaneseq
      %v315 = vshrl.u32 %v314, 7
      %v316 = vsub.s32 0, %v315
      %v317 = vrot.slane %v312, %v316
      %vm319 = vcmask 31744
      %v321 = vsel %vm319, %v279, 0
      %v324 = vsel %vm319, %v280, 0
      %v327 = vsel %vm319, %v281, 0
      %v330 = vsel %vm319, %v282, 0
      %v333 = vsel %vm319, %v283, 0
      %v336 = vsel %vm319, %v284, 0
      %v339 = vsel %vm319, %v285, 0
      %v342 = vsel %vm319, %v286, 0
      %v345 = vsel %vm319, %v287, 0
      %v348 = vsel %vm319, %v288, 0
      %v351 = vsel %vm319, %v289, 0
      %v354 = vsel %vm319, %v290, 0
      %v357 = vsel %vm319, %v291, 0
      %v360 = vsel %vm319, %v292, 0
      %v363 = vsel %vm319, %v293, 0
      %v366 = vsel %vm319, %v294, 0
      %v369 = vsel %vm319, %v295, 0
      %v372 = vsel %vm319, %v296, 0
      %v375 = vsel %vm319, %v297, 0
      %v378 = vsel %vm319, %v298, 0
      %v381 = vsel %vm319, %v299, 0
      %v384 = vsel %vm319, %v300, 0
      %v387 = vsel %vm319, %v301, 0
      %v390 = vsel %vm319, %v302, 0
      %v393 = vsel %vm319, %v303, 0
      %v396 = vsel %vm319, %v304, 0
      %v399 = vsel %vm319, %v305, 0
      %v402 = vsel %vm319, %v306, 0
      %v405 = vsel %vm319, %v307, 0
      %v408 = vsel %vm319, %v308, 0
      %v411 = vsel %vm319, %v309, 0
      %v414 = vsel %vm319, %v310, 0
      %vm416 = vcmask 1043456
      %v418 = vsel %vm416, %v311, 0
      %420 = vmatprep.subr.mxu0 0.0
      %421 = vmatpush1.msra.mxu0 %v418
      %422 = vmatprep.subr.mxu0 0.0
      %423 = vmatpush1.msra.mxu0 0.0
      %424 = vmatprep.subr.mxu0 0.0
      %425 = vmatpush1.msra.mxu0 0.0
      %426 = vmatprep.subr.mxu0 0.0
      %427 = vmatpush1.msra.mxu0 0.0
      %428 = vmatprep.subr.mxu0 0.0
      %429 = vmatpush1.msra.mxu0 0.0
      %430 = vmatprep.subr.mxu0 0.0
      %431 = vmatpush1.msra.mxu0 0.0
      %432 = vmatprep.subr.mxu0 0.0
      %433 = vmatpush1.msra.mxu0 0.0
      %434 = vmatprep.subr.mxu0 0.0
      %435 = vmatpush1.msra.mxu0 0.0
      %436 = vmatprep.subr.mxu0 0.0
      %437 = vmatpush1.msra.mxu0 0.0
      %438 = vmatprep.subr.mxu0 0.0
      %439 = vmatpush1.msra.mxu0 0.0
      %440 = vmatprep.subr.mxu0 0.0
      %441 = vmatpush1.msra.mxu0 0.0
      %442 = vmatprep.subr.mxu0 0.0
      %443 = vmatpush1.msra.mxu0 0.0
      %444 = vmatprep.subr.mxu0 0.0
      %445 = vmatpush1.msra.mxu0 0.0
      %446 = vmatprep.subr.mxu0 0.0
      %447 = vmatpush1.msra.mxu0 0.0
      %448 = vmatprep.subr.mxu0 0.0
      %449 = vmatpush1.msra.mxu0 0.0
      %450 = vmatprep.subr.mxu0 0.0
      %451 = vmatpush1.msra.mxu0 0.0
      %452 = vmatprep.subr.mxu0 0.0
      %453 = vmatpush1.msra.mxu0 0.0
      %454 = vmatprep.subr.mxu0 0.0
      %455 = vmatpush1.msra.mxu0 0.0
      %456 = vmatprep.subr.mxu0 0.0
      %457 = vmatpush1.msra.mxu0 0.0
      %458 = vmatprep.subr.mxu0 0.0
      %459 = vmatpush1.msra.mxu0 0.0
      %460 = vmatprep.subr.mxu0 0.0
      %461 = vmatpush1.msra.mxu0 0.0
      %462 = vmatprep.subr.mxu0 0.0
      %463 = vmatpush1.msra.mxu0 0.0
      %464 = vmatprep.subr.mxu0 0.0
      %465 = vmatpush1.msra.mxu0 0.0
      %466 = vmatprep.subr.mxu0 0.0
      %467 = vmatpush1.msra.mxu0 0.0
      %468 = vmatprep.subr.mxu0 0.0
      %469 = vmatpush1.msra.mxu0 0.0
      %470 = vmatprep.subr.mxu0 0.0
      %471 = vmatpush1.msra.mxu0 0.0
      %472 = vmatprep.subr.mxu0 0.0
      %473 = vmatpush1.msra.mxu0 0.0
      %474 = vmatprep.subr.mxu0 0.0
      %475 = vmatpush1.msra.mxu0 0.0
      %476 = vmatprep.subr.mxu0 0.0
      %477 = vmatpush1.msra.mxu0 0.0
      %478 = vmatprep.subr.mxu0 0.0
      %479 = vmatpush1.msra.mxu0 0.0
      %480 = vmatprep.subr.mxu0 0.0
      %481 = vmatpush1.msra.mxu0 0.0
      %482 = vmatprep.subr.mxu0 0.0
      %483 = vmatpush1.msra.mxu0 0.0
      %484 = vmatprep.mubr.f32.mxu0 0.0
      %485 = vmatmul.mubr.f32.gmra.mrb[0].mxu0 %v321
      %v486 = vpop.f32.mrb[0].mxu0
      %v487 = vadd.f32 %v317, %v486
      %v488 = vpop.f32.mrb[0].mxu0
      %489 = vmatprep.mubr.f32.mxu0 0.0
      %490 = vmatmul.mubr.f32.gmra.mrb[0].mxu0 %v324
      %v491 = vpop.f32.mrb[0].mxu0
      %v492 = vadd.f32 %v317, %v491
      %v493 = vpop.f32.mrb[0].mxu0
      %494 = vmatprep.mubr.f32.mxu0 0.0
      %495 = vmatmul.mubr.f32.gmra.mrb[0].mxu0 %v327
      %v496 = vpop.f32.mrb[0].mxu0
      %v497 = vadd.f32 %v317, %v496
      %v498 = vpop.f32.mrb[0].mxu0
      %499 = vmatprep.mubr.f32.mxu0 0.0
      %500 = vmatmul.mubr.f32.gmra.mrb[0].mxu0 %v330
      %v501 = vpop.f32.mrb[0].mxu0
      %v502 = vadd.f32 %v317, %v501
      %v503 = vpop.f32.mrb[0].mxu0
      %504 = vmatprep.mubr.f32.mxu0 0.0
      %505 = vmatmul.mubr.f32.gmra.mrb[0].mxu0 %v333
      %v506 = vpop.f32.mrb[0].mxu0
      %v507 = vadd.f32 %v317, %v506
      %v508 = vpop.f32.mrb[0].mxu0
      %509 = vmatprep.mubr.f32.mxu0 0.0
      %510 = vmatmul.mubr.f32.gmra.mrb[0].mxu0 %v336
      %v511 = vpop.f32.mrb[0].mxu0
      %v512 = vadd.f32 %v317, %v511
      %v513 = vpop.f32.mrb[0].mxu0
      %514 = vmatprep.mubr.f32.mxu0 0.0
      %515 = vmatmul.mubr.f32.gmra.mrb[0].mxu0 %v339
      %v516 = vpop.f32.mrb[0].mxu0
      %v517 = vadd.f32 %v317, %v516
      %v518 = vpop.f32.mrb[0].mxu0
      %519 = vmatprep.mubr.f32.mxu0 0.0
      %520 = vmatmul.mubr.f32.gmra.mrb[0].mxu0 %v342
      %v521 = vpop.f32.mrb[0].mxu0
      %v522 = vadd.f32 %v317, %v521
      %v523 = vpop.f32.mrb[0].mxu0
      %524 = vmatprep.mubr.f32.mxu0 0.0
      %525 = vmatmul.mubr.f32.gmra.mrb[0].mxu0 %v345
      %v526 = vpop.f32.mrb[0].mxu0
      %v527 = vadd.f32 %v317, %v526
      %v528 = vpop.f32.mrb[0].mxu0
      %529 = vmatprep.mubr.f32.mxu0 0.0
      %530 = vmatmul.mubr.f32.gmra.mrb[0].mxu0 %v348
      %v531 = vpop.f32.mrb[0].mxu0
      %v532 = vadd.f32 %v317, %v531
      %v533 = vpop.f32.mrb[0].mxu0
      %534 = vmatprep.mubr.f32.mxu0 0.0
      %535 = vmatmul.mubr.f32.gmra.mrb[0].mxu0 %v351
      %v536 = vpop.f32.mrb[0].mxu0
      %v537 = vadd.f32 %v317, %v536
      %v538 = vpop.f32.mrb[0].mxu0
      %539 = vmatprep.mubr.f32.mxu0 0.0
      %540 = vmatmul.mubr.f32.gmra.mrb[0].mxu0 %v354
      %v541 = vpop.f32.mrb[0].mxu0
      %v542 = vadd.f32 %v317, %v541
      %v543 = vpop.f32.mrb[0].mxu0
      %544 = vmatprep.mubr.f32.mxu0 0.0
      %545 = vmatmul.mubr.f32.gmra.mrb[0].mxu0 %v357
      %v546 = vpop.f32.mrb[0].mxu0
      %v547 = vadd.f32 %v317, %v546
      %v548 = vpop.f32.mrb[0].mxu0
      %549 = vmatprep.mubr.f32.mxu0 0.0
      %550 = vmatmul.mubr.f32.gmra.mrb[0].mxu0 %v360
      %v551 = vpop.f32.mrb[0].mxu0
      %v552 = vadd.f32 %v317, %v551
      %v553 = vpop.f32.mrb[0].mxu0
      %554 = vmatprep.mubr.f32.mxu0 0.0
      %555 = vmatmul.mubr.f32.gmra.mrb[0].mxu0 %v363
      %v556 = vpop.f32.mrb[0].mxu0
      %v557 = vadd.f32 %v317, %v556
      %v558 = vpop.f32.mrb[0].mxu0
      %559 = vmatprep.mubr.f32.mxu0 0.0
      %560 = vmatmul.mubr.f32.gmra.mrb[0].mxu0 %v366
      %v561 = vpop.f32.mrb[0].mxu0
      %v562 = vadd.f32 %v317, %v561
      %v563 = vpop.f32.mrb[0].mxu0
      %564 = vmatprep.mubr.f32.mxu0 0.0
      %565 = vmatmul.mubr.f32.gmra.mrb[0].mxu0 %v369
      %v566 = vpop.f32.mrb[0].mxu0
      %v567 = vadd.f32 %v317, %v566
      %v568 = vpop.f32.mrb[0].mxu0
      %569 = vmatprep.mubr.f32.mxu0 0.0
      %570 = vmatmul.mubr.f32.gmra.mrb[0].mxu0 %v372
      %v571 = vpop.f32.mrb[0].mxu0
      %v572 = vadd.f32 %v317, %v571
      %v573 = vpop.f32.mrb[0].mxu0
      %574 = vmatprep.mubr.f32.mxu0 0.0
      %575 = vmatmul.mubr.f32.gmra.mrb[0].mxu0 %v375
      %v576 = vpop.f32.mrb[0].mxu0
      %v577 = vadd.f32 %v317, %v576
      %v578 = vpop.f32.mrb[0].mxu0
      %579 = vmatprep.mubr.f32.mxu0 0.0
      %580 = vmatmul.mubr.f32.gmra.mrb[0].mxu0 %v378
      %v581 = vpop.f32.mrb[0].mxu0
      %v582 = vadd.f32 %v317, %v581
      %v583 = vpop.f32.mrb[0].mxu0
      %584 = vmatprep.mubr.f32.mxu0 0.0
      %585 = vmatmul.mubr.f32.gmra.mrb[0].mxu0 %v381
      %v586 = vpop.f32.mrb[0].mxu0
      %v587 = vadd.f32 %v317, %v586
      %v588 = vpop.f32.mrb[0].mxu0
      %589 = vmatprep.mubr.f32.mxu0 0.0
      %590 = vmatmul.mubr.f32.gmra.mrb[0].mxu0 %v384
      %v591 = vpop.f32.mrb[0].mxu0
      %v592 = vadd.f32 %v317, %v591
      %v593 = vpop.f32.mrb[0].mxu0
      %594 = vmatprep.mubr.f32.mxu0 0.0
      %595 = vmatmul.mubr.f32.gmra.mrb[0].mxu0 %v387
      %v596 = vpop.f32.mrb[0].mxu0
      %v597 = vadd.f32 %v317, %v596
      %v598 = vpop.f32.mrb[0].mxu0
      %599 = vmatprep.mubr.f32.mxu0 0.0
      %600 = vmatmul.mubr.f32.gmra.mrb[0].mxu0 %v390
      %v601 = vpop.f32.mrb[0].mxu0
      %v602 = vadd.f32 %v317, %v601
      %v603 = vpop.f32.mrb[0].mxu0
      %604 = vmatprep.mubr.f32.mxu0 0.0
      %605 = vmatmul.mubr.f32.gmra.mrb[0].mxu0 %v393
      %v606 = vpop.f32.mrb[0].mxu0
      %v607 = vadd.f32 %v317, %v606
      %v608 = vpop.f32.mrb[0].mxu0
      %609 = vmatprep.mubr.f32.mxu0 0.0
      %610 = vmatmul.mubr.f32.gmra.mrb[0].mxu0 %v396
      %v611 = vpop.f32.mrb[0].mxu0
      %v612 = vadd.f32 %v317, %v611
      %v613 = vpop.f32.mrb[0].mxu0
      %614 = vmatprep.mubr.f32.mxu0 0.0
      %615 = vmatmul.mubr.f32.gmra.mrb[0].mxu0 %v399
      %v616 = vpop.f32.mrb[0].mxu0
      %v617 = vadd.f32 %v317, %v616
      %v618 = vpop.f32.mrb[0].mxu0
      %619 = vmatprep.mubr.f32.mxu0 0.0
      %620 = vmatmul.mubr.f32.gmra.mrb[0].mxu0 %v402
      %v621 = vpop.f32.mrb[0].mxu0
      %v622 = vadd.f32 %v317, %v621
      %v623 = vpop.f32.mrb[0].mxu0
      %624 = vmatprep.mubr.f32.mxu0 0.0
      %625 = vmatmul.mubr.f32.gmra.mrb[0].mxu0 %v405
      %v626 = vpop.f32.mrb[0].mxu0
      %v627 = vadd.f32 %v317, %v626
      %v628 = vpop.f32.mrb[0].mxu0
      %629 = vmatprep.mubr.f32.mxu0 0.0
      %630 = vmatmul.mubr.f32.gmra.mrb[0].mxu0 %v408
      %v631 = vpop.f32.mrb[0].mxu0
      %v632 = vadd.f32 %v317, %v631
      %v633 = vpop.f32.mrb[0].mxu0
      %634 = vmatprep.mubr.f32.mxu0 0.0
      %635 = vmatmul.mubr.f32.gmra.mrb[0].mxu0 %v411
      %v636 = vpop.f32.mrb[0].mxu0
      %v637 = vadd.f32 %v317, %v636
      %v638 = vpop.f32.mrb[0].mxu0
      %639 = vmatprep.mubr.f32.mxu0 0.0
      %640 = vmatmul.mubr.f32.gmra.mrb[0].mxu0 %v414
      %v641 = vpop.f32.mrb[0].mxu0
      %v642 = vadd.f32 %v317, %v641
      %v643 = vpop.f32.mrb[0].mxu0
      %644 = vdwg.mxu0
      %v645 = vmax.f32 %v487, 0.0
      %v646 = vmax.f32 %v492, 0.0
      %v647 = vmax.f32 %v497, 0.0
      %v648 = vmax.f32 %v502, 0.0
      %v649 = vmax.f32 %v507, 0.0
      %v650 = vmax.f32 %v512, 0.0
      %v651 = vmax.f32 %v517, 0.0
      %v652 = vmax.f32 %v522, 0.0
      %v653 = vmax.f32 %v527, 0.0
      %v654 = vmax.f32 %v532, 0.0
      %v655 = vmax.f32 %v537, 0.0
      %v656 = vmax.f32 %v542, 0.0
      %v657 = vmax.f32 %v547, 0.0
      %v658 = vmax.f32 %v552, 0.0
      %v659 = vmax.f32 %v557, 0.0
      %v660 = vmax.f32 %v562, 0.0
      %v661 = vmax.f32 %v567, 0.0
      %v662 = vmax.f32 %v572, 0.0
      %v663 = vmax.f32 %v577, 0.0
      %v664 = vmax.f32 %v582, 0.0
      %v665 = vmax.f32 %v587, 0.0
      %v666 = vmax.f32 %v592, 0.0
      %v667 = vmax.f32 %v597, 0.0
      %v668 = vmax.f32 %v602, 0.0
      %v669 = vmax.f32 %v607, 0.0
      %v670 = vmax.f32 %v612, 0.0
      %v671 = vmax.f32 %v617, 0.0
      %v672 = vmax.f32 %v622, 0.0
      %v673 = vmax.f32 %v627, 0.0
      %v674 = vmax.f32 %v632, 0.0
      %v675 = vmax.f32 %v637, 0.0
      %v676 = vmax.f32 %v642, 0.0
      %v677 = vmin.f32 %v645, 6.0
      %v678 = vmin.f32 %v646, 6.0
      %v679 = vmin.f32 %v647, 6.0
      %v680 = vmin.f32 %v648, 6.0
      %v681 = vmin.f32 %v649, 6.0
      %v682 = vmin.f32 %v650, 6.0
      %v683 = vmin.f32 %v651, 6.0
      %v684 = vmin.f32 %v652, 6.0
      %v685 = vmin.f32 %v653, 6.0
      %v686 = vmin.f32 %v654, 6.0
      %v687 = vmin.f32 %v655, 6.0
      %v688 = vmin.f32 %v656, 6.0
      %v689 = vmin.f32 %v657, 6.0
      %v690 = vmin.f32 %v658, 6.0
      %v691 = vmin.f32 %v659, 6.0
      %v692 = vmin.f32 %v660, 6.0
      %v693 = vmin.f32 %v661, 6.0
      %v694 = vmin.f32 %v662, 6.0
      %v695 = vmin.f32 %v663, 6.0
      %v696 = vmin.f32 %v664, 6.0
      %v697 = vmin.f32 %v665, 6.0
      %v698 = vmin.f32 %v666, 6.0
      %v699 = vmin.f32 %v667, 6.0
      %v700 = vmin.f32 %v668, 6.0
      %v701 = vmin.f32 %v669, 6.0
      %v702 = vmin.f32 %v670, 6.0
      %v703 = vmin.f32 %v671, 6.0
      %v704 = vmin.f32 %v672, 6.0
      %v705 = vmin.f32 %v673, 6.0
      %v706 = vmin.f32 %v674, 6.0
      %v707 = vmin.f32 %v675, 6.0
      %v708 = vmin.f32 %v676, 6.0
      %v709 = vld [vmem:[%s3] sm:$0xff]
      %v710 = vld [vmem:[%s3 + $0x8] sm:$0x1]
      %v711 = vlaneseq
      %v712 = vshrl.u32 %v711, 7
      %v713 = vsub.s32 0, %v712
      %v714 = vrot.slane %v709, %v713
      %v715 = vmul.f32 %v714, 0.0
      %v716 = vmul.f32 %v677, %v714
      %v717 = vmul.f32 %v678, %v714
      %v718 = vmul.f32 %v679, %v714
      %v719 = vmul.f32 %v680, %v714
      %v720 = vmul.f32 %v681, %v714
      %v721 = vmul.f32 %v682, %v714
      %v722 = vmul.f32 %v683, %v714
      %v723 = vmul.f32 %v684, %v714
      %v724 = vmul.f32 %v685, %v714
      %v725 = vmul.f32 %v686, %v714
      %v726 = vmul.f32 %v687, %v714
      %v727 = vmul.f32 %v688, %v714
      %v728 = vmul.f32 %v689, %v714
      %v729 = vmul.f32 %v690, %v714
      %v730 = vmul.f32 %v691, %v714
      %v731 = vmul.f32 %v692, %v714
      %v732 = vmul.f32 %v693, %v714
      %v733 = vmul.f32 %v694, %v714
      %v734 = vmul.f32 %v695, %v714
      %v735 = vmul.f32 %v696, %v714
      %v736 = vmul.f32 %v697, %v714
      %v737 = vmul.f32 %v698, %v714
      %v738 = vmul.f32 %v699, %v714
      %v739 = vmul.f32 %v700, %v714
      %v740 = vmul.f32 %v701, %v714
      %v741 = vmul.f32 %v702, %v714
      %v742 = vmul.f32 %v703, %v714
      %v743 = vmul.f32 %v704, %v714
      %v744 = vmul.f32 %v705, %v714
      %v745 = vmul.f32 %v706, %v714
      %v746 = vadd.f32 %v715, 0.0
      %v747 = vadd.f32 %v716, 0.0
      %v748 = vadd.f32 %v717, 0.0
      %v749 = vadd.f32 %v718, 0.0
      %v750 = vadd.f32 %v719, 0.0
      %v751 = vadd.f32 %v720, 0.0
      %v752 = vadd.f32 %v721, 0.0
      %v753 = vadd.f32 %v722, 0.0
      %v754 = vadd.f32 %v723, 0.0
      %v755 = vadd.f32 %v724, 0.0
      %v756 = vadd.f32 %v725, 0.0
      %v757 = vadd.f32 %v726, 0.0
      %v758 = vadd.f32 %v727, 0.0
      %v759 = vadd.f32 %v728, 0.0
      %v760 = vadd.f32 %v729, 0.0
      %v761 = vadd.f32 %v730, 0.0
      %v762 = vadd.f32 %v731, 0.0
      %v763 = vadd.f32 %v732, 0.0
      %v764 = vadd.f32 %v733, 0.0
      %v765 = vadd.f32 %v734, 0.0
      %v766 = vadd.f32 %v735, 0.0
      %v767 = vadd.f32 %v736, 0.0
      %v768 = vadd.f32 %v737, 0.0
      %v769 = vadd.f32 %v738, 0.0
      %v770 = vadd.f32 %v739, 0.0
      %v771 = vadd.f32 %v740, 0.0
      %v772 = vadd.f32 %v741, 0.0
      %v773 = vadd.f32 %v742, 0.0
      %v774 = vadd.f32 %v743, 0.0
      %v775 = vadd.f32 %v744, 0.0
      %v776 = vadd.f32 %v745, 0.0
      %v777 = vlaneseq
      %v778 = vshrl.u32 %v777, 7
      %v779 = vsub.s32 1, %v778
      %v780 = vrot.slane %v709, %v779
      %v781 = vmul.f32 %v780, 0.0
      %v782 = vmul.f32 %v677, %v780
      %v783 = vmul.f32 %v678, %v780
      %v784 = vmul.f32 %v679, %v780
      %v785 = vmul.f32 %v680, %v780
      %v786 = vmul.f32 %v681, %v780
      %v787 = vmul.f32 %v682, %v780
      %v788 = vmul.f32 %v683, %v780
      %v789 = vmul.f32 %v684, %v780
      %v790 = vmul.f32 %v685, %v780
      %v791 = vmul.f32 %v686, %v780
      %v792 = vmul.f32 %v687, %v780
      %v793 = vmul.f32 %v688, %v780
      %v794 = vmul.f32 %v689, %v780
      %v795 = vmul.f32 %v690, %v780
      %v796 = vmul.f32 %v691, %v780
      %v797 = vmul.f32 %v692, %v780
      %v798 = vmul.f32 %v693, %v780
      %v799 = vmul.f32 %v694, %v780
      %v800 = vmul.f32 %v695, %v780
      %v801 = vmul.f32 %v696, %v780
      %v802 = vmul.f32 %v697, %v780
      %v803 = vmul.f32 %v698, %v780
      %v804 = vmul.f32 %v699, %v780
      %v805 = vmul.f32 %v700, %v780
      %v806 = vmul.f32 %v701, %v780
      %v807 = vmul.f32 %v702, %v780
      %v808 = vmul.f32 %v703, %v780
      %v809 = vmul.f32 %v704, %v780
      %v810 = vmul.f32 %v705, %v780
      %v811 = vmul.f32 %v706, %v780
      %vm843 = vcmask 1046528
      %v844 = vrot.slane %v781, 1
      %v845 = vsel %vm843, %v844, %v844
      %v846 = vrot.slane %v782, 1
      %v847 = vrot.slane %v783, 1
      %v848 = vsel %vm843, %v846, %v847
      %v849 = vrot.slane %v784, 1
      %v850 = vrot.slane %v785, 1
      %v851 = vsel %vm843, %v849, %v850
      %v852 = vrot.slane %v786, 1
      %v853 = vrot.slane %v787, 1
      %v854 = vsel %vm843, %v852, %v853
      %v855 = vrot.slane %v788, 1
      %v856 = vrot.slane %v789, 1
      %v857 = vsel %vm843, %v855, %v856
      %v858 = vrot.slane %v790, 1
      %v859 = vrot.slane %v791, 1
      %v860 = vsel %vm843, %v858, %v859
      %v861 = vrot.slane %v792, 1
      %v862 = vrot.slane %v793, 1
      %v863 = vsel %vm843, %v861, %v862
      %v864 = vrot.slane %v794, 1
      %v865 = vrot.slane %v795, 1
      %v866 = vsel %vm843, %v864, %v865
      %v867 = vrot.slane %v796, 1
      %v868 = vrot.slane %v797, 1
      %v869 = vsel %vm843, %v867, %v868
      %v870 = vrot.slane %v798, 1
      %v871 = vrot.slane %v799, 1
      %v872 = vsel %vm843, %v870, %v871
      %v873 = vrot.slane %v800, 1
      %v874 = vrot.slane %v801, 1
      %v875 = vsel %vm843, %v873, %v874
      %v876 = vrot.slane %v802, 1
      %v877 = vrot.slane %v803, 1
      %v878 = vsel %vm843, %v876, %v877
      %v879 = vrot.slane %v804, 1
      %v880 = vrot.slane %v805, 1
      %v881 = vsel %vm843, %v879, %v880
      %v882 = vrot.slane %v806, 1
      %v883 = vrot.slane %v807, 1
      %v884 = vsel %vm843, %v882, %v883
      %v885 = vrot.slane %v808, 1
      %v886 = vrot.slane %v809, 1
      %v887 = vsel %vm843, %v885, %v886
      %v888 = vrot.slane %v810, 1
      %v889 = vrot.slane %v811, 1
      %v890 = vsel %vm843, %v888, %v889
      %v938 = vadd.f32 %v746, %v844
      %v939 = vadd.f32 %v746, %v845
      %v940 = vadd.f32 %v746, %v846
      %v941 = vadd.f32 %v747, %v848
      %v942 = vadd.f32 %v748, %v847
      %v943 = vadd.f32 %v746, %v849
      %v944 = vadd.f32 %v749, %v851
      %v945 = vadd.f32 %v750, %v850
      %v946 = vadd.f32 %v746, %v852
      %v947 = vadd.f32 %v751, %v854
      %v948 = vadd.f32 %v752, %v853
      %v949 = vadd.f32 %v746, %v855
      %v950 = vadd.f32 %v753, %v857
      %v951 = vadd.f32 %v754, %v856
      %v952 = vadd.f32 %v746, %v858
      %v953 = vadd.f32 %v755, %v860
      %v954 = vadd.f32 %v756, %v859
      %v955 = vadd.f32 %v746, %v861
      %v956 = vadd.f32 %v757, %v863
      %v957 = vadd.f32 %v758, %v862
      %v958 = vadd.f32 %v746, %v864
      %v959 = vadd.f32 %v759, %v866
      %v960 = vadd.f32 %v760, %v865
      %v961 = vadd.f32 %v746, %v867
      %v962 = vadd.f32 %v761, %v869
      %v963 = vadd.f32 %v762, %v868
      %v964 = vadd.f32 %v746, %v870
      %v965 = vadd.f32 %v763, %v872
      %v966 = vadd.f32 %v764, %v871
      %v967 = vadd.f32 %v746, %v873
      %v968 = vadd.f32 %v765, %v875
      %v969 = vadd.f32 %v766, %v874
      %v970 = vadd.f32 %v746, %v876
      %v971 = vadd.f32 %v767, %v878
      %v972 = vadd.f32 %v768, %v877
      %v973 = vadd.f32 %v746, %v879
      %v974 = vadd.f32 %v769, %v881
      %v975 = vadd.f32 %v770, %v880
      %v976 = vadd.f32 %v746, %v882
      %v977 = vadd.f32 %v771, %v884
      %v978 = vadd.f32 %v772, %v883
      %v979 = vadd.f32 %v746, %v885
      %v980 = vadd.f32 %v773, %v887
      %v981 = vadd.f32 %v774, %v886
      %v982 = vadd.f32 %v746, %v888
      %v983 = vadd.f32 %v775, %v890
      %v984 = vadd.f32 %v776, %v889
      %v985 = vlaneseq
      %v986 = vshrl.u32 %v985, 7
      %v987 = vsub.s32 2, %v986
      %v988 = vrot.slane %v709, %v987
      %v989 = vmul.f32 %v988, 0.0
      %v990 = vmul.f32 %v677, %v988
      %v991 = vmul.f32 %v678, %v988
      %v992 = vmul.f32 %v679, %v988
      %v993 = vmul.f32 %v680, %v988
      %v994 = vmul.f32 %v681, %v988
      %v995 = vmul.f32 %v682, %v988
      %v996 = vmul.f32 %v683, %v988
      %v997 = vmul.f32 %v684, %v988
      %v998 = vmul.f32 %v685, %v988
      %v999 = vmul.f32 %v686, %v988
      %v1000 = vmul.f32 %v687, %v988
      %v1001 = vmul.f32 %v688, %v988
      %v1002 = vmul.f32 %v689, %v988
      %v1003 = vmul.f32 %v690, %v988
      %v1004 = vmul.f32 %v691, %v988
      %v1005 = vmul.f32 %v692, %v988
      %v1006 = vmul.f32 %v693, %v988
      %v1007 = vmul.f32 %v694, %v988
      %v1008 = vmul.f32 %v695, %v988
      %v1009 = vmul.f32 %v696, %v988
      %v1010 = vmul.f32 %v697, %v988
      %v1011 = vmul.f32 %v698, %v988
      %v1012 = vmul.f32 %v699, %v988
      %v1013 = vmul.f32 %v700, %v988
      %v1014 = vmul.f32 %v701, %v988
      %v1015 = vmul.f32 %v702, %v988
      %v1016 = vmul.f32 %v703, %v988
      %v1017 = vmul.f32 %v704, %v988
      %v1018 = vmul.f32 %v705, %v988
      %v1019 = vmul.f32 %v706, %v988
      %vm1051 = vcmask 1045504
      %v1052 = vrot.slane %v989, 2
      %v1053 = vsel %vm1051, %v1052, %v1052
      %v1054 = vrot.slane %v990, 2
      %v1055 = vrot.slane %v991, 2
      %v1056 = vsel %vm1051, %v1054, %v1055
      %v1057 = vsel %vm1051, %v1055, %v1052
      %v1058 = vrot.slane %v992, 2
      %v1059 = vrot.slane %v993, 2
      %v1060 = vsel %vm1051, %v1058, %v1059
      %v1061 = vsel %vm1051, %v1059, %v1052
      %v1062 = vrot.slane %v994, 2
      %v1063 = vrot.slane %v995, 2
      %v1064 = vsel %vm1051, %v1062, %v1063
      %v1065 = vsel %vm1051, %v1063, %v1052
      %v1066 = vrot.slane %v996, 2
      %v1067 = vrot.slane %v997, 2
      %v1068 = vsel %vm1051, %v1066, %v1067
      %v1069 = vsel %vm1051, %v1067, %v1052
      %v1070 = vrot.slane %v998, 2
      %v1071 = vrot.slane %v999, 2
      %v1072 = vsel %vm1051, %v1070, %v1071
      %v1073 = vsel %vm1051, %v1071, %v1052
      %v1074 = vrot.slane %v1000, 2
      %v1075 = vrot.slane %v1001, 2
      %v1076 = vsel %vm1051, %v1074, %v1075
      %v1077 = vsel %vm1051, %v1075, %v1052
      %v1078 = vrot.slane %v1002, 2
      %v1079 = vrot.slane %v1003, 2
      %v1080 = vsel %vm1051, %v1078, %v1079
      %v1081 = vsel %vm1051, %v1079, %v1052
      %v1082 = vrot.slane %v1004, 2
      %v1083 = vrot.slane %v1005, 2
      %v1084 = vsel %vm1051, %v1082, %v1083
      %v1085 = vsel %vm1051, %v1083, %v1052
      %v1086 = vrot.slane %v1006, 2
      %v1087 = vrot.slane %v1007, 2
      %v1088 = vsel %vm1051, %v1086, %v1087
      %v1089 = vsel %vm1051, %v1087, %v1052
      %v1090 = vrot.slane %v1008, 2
      %v1091 = vrot.slane %v1009, 2
      %v1092 = vsel %vm1051, %v1090, %v1091
      %v1093 = vsel %vm1051, %v1091, %v1052
      %v1094 = vrot.slane %v1010, 2
      %v1095 = vrot.slane %v1011, 2
      %v1096 = vsel %vm1051, %v1094, %v1095
      %v1097 = vsel %vm1051, %v1095, %v1052
      %v1098 = vrot.slane %v1012, 2
      %v1099 = vrot.slane %v1013, 2
      %v1100 = vsel %vm1051, %v1098, %v1099
      %v1101 = vsel %vm1051, %v1099, %v1052
      %v1102 = vrot.slane %v1014, 2
      %v1103 = vrot.slane %v1015, 2
      %v1104 = vsel %vm1051, %v1102, %v1103
      %v1105 = vsel %vm1051, %v1103, %v1052
      %v1106 = vrot.slane %v1016, 2
      %v1107 = vrot.slane %v1017, 2
      %v1108 = vsel %vm1051, %v1106, %v1107
      %v1109 = vsel %vm1051, %v1107, %v1052
      %v1110 = vrot.slane %v1018, 2
      %v1111 = vrot.slane %v1019, 2
      %v1112 = vsel %vm1051, %v1110, %v1111
      %v1113 = vsel %vm1051, %v1111, %v1052
      %v1161 = vadd.f32 %v938, %v1052
      %v1162 = vadd.f32 %v939, %v1053
      %v1163 = vadd.f32 %v938, %v1053
      %v1164 = vadd.f32 %v940, %v1054
      %v1165 = vadd.f32 %v941, %v1056
      %v1166 = vadd.f32 %v942, %v1057
      %v1167 = vadd.f32 %v943, %v1058
      %v1168 = vadd.f32 %v944, %v1060
      %v1169 = vadd.f32 %v945, %v1061
      %v1170 = vadd.f32 %v946, %v1062
      %v1171 = vadd.f32 %v947, %v1064
      %v1172 = vadd.f32 %v948, %v1065
      %v1173 = vadd.f32 %v949, %v1066
      %v1174 = vadd.f32 %v950, %v1068
      %v1175 = vadd.f32 %v951, %v1069
      %v1176 = vadd.f32 %v952, %v1070
      %v1177 = vadd.f32 %v953, %v1072
      %v1178 = vadd.f32 %v954, %v1073
      %v1179 = vadd.f32 %v955, %v1074
      %v1180 = vadd.f32 %v956, %v1076
      %v1181 = vadd.f32 %v957, %v1077
      %v1182 = vadd.f32 %v958, %v1078
      %v1183 = vadd.f32 %v959, %v1080
      %v1184 = vadd.f32 %v960, %v1081
      %v1185 = vadd.f32 %v961, %v1082
      %v1186 = vadd.f32 %v962, %v1084
      %v1187 = vadd.f32 %v963, %v1085
      %v1188 = vadd.f32 %v964, %v1086
      %v1189 = vadd.f32 %v965, %v1088
      %v1190 = vadd.f32 %v966, %v1089
      %v1191 = vadd.f32 %v967, %v1090
      %v1192 = vadd.f32 %v968, %v1092
      %v1193 = vadd.f32 %v969, %v1093
      %v1194 = vadd.f32 %v970, %v1094
      %v1195 = vadd.f32 %v971, %v1096
      %v1196 = vadd.f32 %v972, %v1097
      %v1197 = vadd.f32 %v973, %v1098
      %v1198 = vadd.f32 %v974, %v1100
      %v1199 = vadd.f32 %v975, %v1101
      %v1200 = vadd.f32 %v976, %v1102
      %v1201 = vadd.f32 %v977, %v1104
      %v1202 = vadd.f32 %v978, %v1105
      %v1203 = vadd.f32 %v979, %v1106
      %v1204 = vadd.f32 %v980, %v1108
      %v1205 = vadd.f32 %v981, %v1109
      %v1206 = vadd.f32 %v982, %v1110
      %v1207 = vadd.f32 %v983, %v1112
      %v1208 = vadd.f32 %v984, %v1113
      %v1209 = vlaneseq
      %v1210 = vshrl.u32 %v1209, 7
      %v1211 = vsub.s32 3, %v1210
      %v1212 = vrot.slane %v709, %v1211
      %v1213 = vmul.f32 %v1212, 0.0
      %v1214 = vmul.f32 %v677, %v1212
      %v1215 = vmul.f32 %v678, %v1212
      %v1216 = vmul.f32 %v679, %v1212
      %v1217 = vmul.f32 %v680, %v1212
      %v1218 = vmul.f32 %v681, %v1212
      %v1219 = vmul.f32 %v682, %v1212
      %v1220 = vmul.f32 %v683, %v1212
      %v1221 = vmul.f32 %v684, %v1212
      %v1222 = vmul.f32 %v685, %v1212
      %v1223 = vmul.f32 %v686, %v1212
      %v1224 = vmul.f32 %v687, %v1212
      %v1225 = vmul.f32 %v688, %v1212
      %v1226 = vmul.f32 %v689, %v1212
      %v1227 = vmul.f32 %v690, %v1212
      %v1228 = vmul.f32 %v691, %v1212
      %v1229 = vmul.f32 %v692, %v1212
      %v1230 = vmul.f32 %v693, %v1212
      %v1231 = vmul.f32 %v694, %v1212
      %v1232 = vmul.f32 %v695, %v1212
      %v1233 = vmul.f32 %v696, %v1212
      %v1234 = vmul.f32 %v697, %v1212
      %v1235 = vmul.f32 %v698, %v1212
      %v1236 = vmul.f32 %v699, %v1212
      %v1237 = vmul.f32 %v700, %v1212
      %v1238 = vmul.f32 %v701, %v1212
      %v1239 = vmul.f32 %v702, %v1212
      %v1240 = vmul.f32 %v703, %v1212
      %v1241 = vmul.f32 %v704, %v1212
      %v1242 = vmul.f32 %v705, %v1212
      %v1243 = vmul.f32 %v706, %v1212
      %v1244 = vmul.f32 %v707, %v1212
      %v1245 = vmul.f32 %v708, %v1212
      %v1246 = vadd.f32 %v1161, %v1213
      %v1247 = vadd.f32 %v1162, %v1214
      %v1248 = vadd.f32 %v1163, %v1215
      %v1249 = vadd.f32 %v1164, %v1213
      %v1250 = vadd.f32 %v1165, %v1216
      %v1251 = vadd.f32 %v1166, %v1217
      %v1252 = vadd.f32 %v1167, %v1213
      %v1253 = vadd.f32 %v1168, %v1218
      %v1254 = vadd.f32 %v1169, %v1219
      %v1255 = vadd.f32 %v1170, %v1213
      %v1256 = vadd.f32 %v1171, %v1220
      %v1257 = vadd.f32 %v1172, %v1221
      %v1258 = vadd.f32 %v1173, %v1213
      %v1259 = vadd.f32 %v1174, %v1222
      %v1260 = vadd.f32 %v1175, %v1223
      %v1261 = vadd.f32 %v1176, %v1213
      %v1262 = vadd.f32 %v1177, %v1224
      %v1263 = vadd.f32 %v1178, %v1225
      %v1264 = vadd.f32 %v1179, %v1213
      %v1265 = vadd.f32 %v1180, %v1226
      %v1266 = vadd.f32 %v1181, %v1227
      %v1267 = vadd.f32 %v1182, %v1213
      %v1268 = vadd.f32 %v1183, %v1228
      %v1269 = vadd.f32 %v1184, %v1229
      %v1270 = vadd.f32 %v1185, %v1213
      %v1271 = vadd.f32 %v1186, %v1230
      %v1272 = vadd.f32 %v1187, %v1231
      %v1273 = vadd.f32 %v1188, %v1213
      %v1274 = vadd.f32 %v1189, %v1232
      %v1275 = vadd.f32 %v1190, %v1233
      %v1276 = vadd.f32 %v1191, %v1213
      %v1277 = vadd.f32 %v1192, %v1234
      %v1278 = vadd.f32 %v1193, %v1235
      %v1279 = vadd.f32 %v1194, %v1213
      %v1280 = vadd.f32 %v1195, %v1236
      %v1281 = vadd.f32 %v1196, %v1237
      %v1282 = vadd.f32 %v1197, %v1213
      %v1283 = vadd.f32 %v1198, %v1238
      %v1284 = vadd.f32 %v1199, %v1239
      %v1285 = vadd.f32 %v1200, %v1213
      %v1286 = vadd.f32 %v1201, %v1240
      %v1287 = vadd.f32 %v1202, %v1241
      %v1288 = vadd.f32 %v1203, %v1213
      %v1289 = vadd.f32 %v1204, %v1242
      %v1290 = vadd.f32 %v1205, %v1243
      %v1291 = vadd.f32 %v1206, %v1213
      %v1292 = vadd.f32 %v1207, %v1244
      %v1293 = vadd.f32 %v1208, %v1245
      %v1294 = vlaneseq
      %v1295 = vshrl.u32 %v1294, 7
      %v1296 = vsub.s32 4, %v1295
      %v1297 = vrot.slane %v709, %v1296
      %v1298 = vmul.f32 %v677, %v1297
      %v1299 = vmul.f32 %v678, %v1297
      %v1300 = vmul.f32 %v679, %v1297
      %v1301 = vmul.f32 %v680, %v1297
      %v1302 = vmul.f32 %v681, %v1297
      %v1303 = vmul.f32 %v682, %v1297
      %v1304 = vmul.f32 %v683, %v1297
      %v1305 = vmul.f32 %v684, %v1297
      %v1306 = vmul.f32 %v685, %v1297
      %v1307 = vmul.f32 %v686, %v1297
      %v1308 = vmul.f32 %v687, %v1297
      %v1309 = vmul.f32 %v688, %v1297
      %v1310 = vmul.f32 %v689, %v1297
      %v1311 = vmul.f32 %v690, %v1297
      %v1312 = vmul.f32 %v691, %v1297
      %v1313 = vmul.f32 %v692, %v1297
      %v1314 = vmul.f32 %v693, %v1297
      %v1315 = vmul.f32 %v694, %v1297
      %v1316 = vmul.f32 %v695, %v1297
      %v1317 = vmul.f32 %v696, %v1297
      %v1318 = vmul.f32 %v697, %v1297
      %v1319 = vmul.f32 %v698, %v1297
      %v1320 = vmul.f32 %v699, %v1297
      %v1321 = vmul.f32 %v700, %v1297
      %v1322 = vmul.f32 %v701, %v1297
      %v1323 = vmul.f32 %v702, %v1297
      %v1324 = vmul.f32 %v703, %v1297
      %v1325 = vmul.f32 %v704, %v1297
      %v1326 = vmul.f32 %v705, %v1297
      %v1327 = vmul.f32 %v706, %v1297
      %v1328 = vmul.f32 %v707, %v1297
      %v1329 = vmul.f32 %v708, %v1297
      %v1362 = vrot.slane %v1298, 1
      %v1363 = vrot.slane %v1299, 1
      %v1364 = vsel %vm843, %v1362, %v1363
      %v1365 = vrot.slane %v1300, 1
      %v1366 = vrot.slane %v1301, 1
      %v1367 = vsel %vm843, %v1365, %v1366
      %v1368 = vrot.slane %v1302, 1
      %v1369 = vrot.slane %v1303, 1
      %v1370 = vsel %vm843, %v1368, %v1369
      %v1371 = vrot.slane %v1304, 1
      %v1372 = vrot.slane %v1305, 1
      %v1373 = vsel %vm843, %v1371, %v1372
      %v1374 = vrot.slane %v1306, 1
      %v1375 = vrot.slane %v1307, 1
      %v1376 = vsel %vm843, %v1374, %v1375
      %v1377 = vrot.slane %v1308, 1
      %v1378 = vrot.slane %v1309, 1
      %v1379 = vsel %vm843, %v1377, %v1378
      %v1380 = vrot.slane %v1310, 1
      %v1381 = vrot.slane %v1311, 1
      %v1382 = vsel %vm843, %v1380, %v1381
      %v1383 = vrot.slane %v1312, 1
      %v1384 = vrot.slane %v1313, 1
      %v1385 = vsel %vm843, %v1383, %v1384
      %v1386 = vrot.slane %v1314, 1
      %v1387 = vrot.slane %v1315, 1
      %v1388 = vsel %vm843, %v1386, %v1387
      %v1389 = vrot.slane %v1316, 1
      %v1390 = vrot.slane %v1317, 1
      %v1391 = vsel %vm843, %v1389, %v1390
      %v1392 = vrot.slane %v1318, 1
      %v1393 = vrot.slane %v1319, 1
      %v1394 = vsel %vm843, %v1392, %v1393
      %v1395 = vrot.slane %v1320, 1
      %v1396 = vrot.slane %v1321, 1
      %v1397 = vsel %vm843, %v1395, %v1396
      %v1398 = vrot.slane %v1322, 1
      %v1399 = vrot.slane %v1323, 1
      %v1400 = vsel %vm843, %v1398, %v1399
      %v1401 = vrot.slane %v1324, 1
      %v1402 = vrot.slane %v1325, 1
      %v1403 = vsel %vm843, %v1401, %v1402
      %v1404 = vrot.slane %v1326, 1
      %v1405 = vrot.slane %v1327, 1
      %v1406 = vsel %vm843, %v1404, %v1405
      %v1407 = vrot.slane %v1328, 1
      %v1408 = vrot.slane %v1329, 1
      %v1409 = vsel %vm843, %v1407, %v1408
      %v1458 = vadd.f32 %v1246, %v1362
      %v1459 = vadd.f32 %v1247, %v1364
      %v1460 = vadd.f32 %v1248, %v1363
      %v1461 = vadd.f32 %v1249, %v1365
      %v1462 = vadd.f32 %v1250, %v1367
      %v1463 = vadd.f32 %v1251, %v1366
      %v1464 = vadd.f32 %v1252, %v1368
      %v1465 = vadd.f32 %v1253, %v1370
      %v1466 = vadd.f32 %v1254, %v1369
      %v1467 = vadd.f32 %v1255, %v1371
      %v1468 = vadd.f32 %v1256, %v1373
      %v1469 = vadd.f32 %v1257, %v1372
      %v1470 = vadd.f32 %v1258, %v1374
      %v1471 = vadd.f32 %v1259, %v1376
      %v1472 = vadd.f32 %v1260, %v1375
      %v1473 = vadd.f32 %v1261, %v1377
      %v1474 = vadd.f32 %v1262, %v1379
      %v1475 = vadd.f32 %v1263, %v1378
      %v1476 = vadd.f32 %v1264, %v1380
      %v1477 = vadd.f32 %v1265, %v1382
      %v1478 = vadd.f32 %v1266, %v1381
      %v1479 = vadd.f32 %v1267, %v1383
      %v1480 = vadd.f32 %v1268, %v1385
      %v1481 = vadd.f32 %v1269, %v1384
      %v1482 = vadd.f32 %v1270, %v1386
      %v1483 = vadd.f32 %v1271, %v1388
      %v1484 = vadd.f32 %v1272, %v1387
      %v1485 = vadd.f32 %v1273, %v1389
      %v1486 = vadd.f32 %v1274, %v1391
      %v1487 = vadd.f32 %v1275, %v1390
      %v1488 = vadd.f32 %v1276, %v1392
      %v1489 = vadd.f32 %v1277, %v1394
      %v1490 = vadd.f32 %v1278, %v1393
      %v1491 = vadd.f32 %v1279, %v1395
      %v1492 = vadd.f32 %v1280, %v1397
      %v1493 = vadd.f32 %v1281, %v1396
      %v1494 = vadd.f32 %v1282, %v1398
      %v1495 = vadd.f32 %v1283, %v1400
      %v1496 = vadd.f32 %v1284, %v1399
      %v1497 = vadd.f32 %v1285, %v1401
      %v1498 = vadd.f32 %v1286, %v1403
      %v1499 = vadd.f32 %v1287, %v1402
      %v1500 = vadd.f32 %v1288, %v1404
      %v1501 = vadd.f32 %v1289, %v1406
      %v1502 = vadd.f32 %v1290, %v1405
      %v1503 = vadd.f32 %v1291, %v1407
      %v1504 = vadd.f32 %v1292, %v1409
      %v1505 = vadd.f32 %v1293, %v1408
      %v1506 = vlaneseq
      %v1507 = vshrl.u32 %v1506, 7
      %v1508 = vsub.s32 5, %v1507
      %v1509 = vrot.slane %v709, %v1508
      %v1510 = vmul.f32 %v677, %v1509
      %v1511 = vmul.f32 %v678, %v1509
      %v1512 = vmul.f32 %v1509, 0.0
      %v1513 = vmul.f32 %v679, %v1509
      %v1514 = vmul.f32 %v680, %v1509
      %v1515 = vmul.f32 %v681, %v1509
      %v1516 = vmul.f32 %v682, %v1509
      %v1517 = vmul.f32 %v683, %v1509
      %v1518 = vmul.f32 %v684, %v1509
      %v1519 = vmul.f32 %v685, %v1509
      %v1520 = vmul.f32 %v686, %v1509
      %v1521 = vmul.f32 %v687, %v1509
      %v1522 = vmul.f32 %v688, %v1509
      %v1523 = vmul.f32 %v689, %v1509
      %v1524 = vmul.f32 %v690, %v1509
      %v1525 = vmul.f32 %v691, %v1509
      %v1526 = vmul.f32 %v692, %v1509
      %v1527 = vmul.f32 %v693, %v1509
      %v1528 = vmul.f32 %v694, %v1509
      %v1529 = vmul.f32 %v695, %v1509
      %v1530 = vmul.f32 %v696, %v1509
      %v1531 = vmul.f32 %v697, %v1509
      %v1532 = vmul.f32 %v698, %v1509
      %v1533 = vmul.f32 %v699, %v1509
      %v1534 = vmul.f32 %v700, %v1509
      %v1535 = vmul.f32 %v701, %v1509
      %v1536 = vmul.f32 %v702, %v1509
      %v1537 = vmul.f32 %v703, %v1509
      %v1538 = vmul.f32 %v704, %v1509
      %v1539 = vmul.f32 %v705, %v1509
      %v1540 = vmul.f32 %v706, %v1509
      %v1541 = vmul.f32 %v707, %v1509
      %v1542 = vmul.f32 %v708, %v1509
      %v1576 = vrot.slane %v1510, 2
      %v1577 = vrot.slane %v1511, 2
      %v1578 = vsel %vm1051, %v1576, %v1577
      %v1579 = vrot.slane %v1512, 2
      %v1580 = vsel %vm1051, %v1577, %v1579
      %v1581 = vrot.slane %v1513, 2
      %v1582 = vrot.slane %v1514, 2
      %v1583 = vsel %vm1051, %v1581, %v1582
      %v1584 = vsel %vm1051, %v1582, %v1579
      %v1585 = vrot.slane %v1515, 2
      %v1586 = vrot.slane %v1516, 2
      %v1587 = vsel %vm1051, %v1585, %v1586
      %v1588 = vsel %vm1051, %v1586, %v1579
      %v1589 = vrot.slane %v1517, 2
      %v1590 = vrot.slane %v1518, 2
      %v1591 = vsel %vm1051, %v1589, %v1590
      %v1592 = vsel %vm1051, %v1590, %v1579
      %v1593 = vrot.slane %v1519, 2
      %v1594 = vrot.slane %v1520, 2
      %v1595 = vsel %vm1051, %v1593, %v1594
      %v1596 = vsel %vm1051, %v1594, %v1579
      %v1597 = vrot.slane %v1521, 2
      %v1598 = vrot.slane %v1522, 2
      %v1599 = vsel %vm1051, %v1597, %v1598
      %v1600 = vsel %vm1051, %v1598, %v1579
      %v1601 = vrot.slane %v1523, 2
      %v1602 = vrot.slane %v1524, 2
      %v1603 = vsel %vm1051, %v1601, %v1602
      %v1604 = vsel %vm1051, %v1602, %v1579
      %v1605 = vrot.slane %v1525, 2
      %v1606 = vrot.slane %v1526, 2
      %v1607 = vsel %vm1051, %v1605, %v1606
      %v1608 = vsel %vm1051, %v1606, %v1579
      %v1609 = vrot.slane %v1527, 2
      %v1610 = vrot.slane %v1528, 2
      %v1611 = vsel %vm1051, %v1609, %v1610
      %v1612 = vsel %vm1051, %v1610, %v1579
      %v1613 = vrot.slane %v1529, 2
      %v1614 = vrot.slane %v1530, 2
      %v1615 = vsel %vm1051, %v1613, %v1614
      %v1616 = vsel %vm1051, %v1614, %v1579
      %v1617 = vrot.slane %v1531, 2
      %v1618 = vrot.slane %v1532, 2
      %v1619 = vsel %vm1051, %v1617, %v1618
      %v1620 = vsel %vm1051, %v1618, %v1579
      %v1621 = vrot.slane %v1533, 2
      %v1622 = vrot.slane %v1534, 2
      %v1623 = vsel %vm1051, %v1621, %v1622
      %v1624 = vsel %vm1051, %v1622, %v1579
      %v1625 = vrot.slane %v1535, 2
      %v1626 = vrot.slane %v1536, 2
      %v1627 = vsel %vm1051, %v1625, %v1626
      %v1628 = vsel %vm1051, %v1626, %v1579
      %v1629 = vrot.slane %v1537, 2
      %v1630 = vrot.slane %v1538, 2
      %v1631 = vsel %vm1051, %v1629, %v1630
      %v1632 = vsel %vm1051, %v1630, %v1579
      %v1633 = vrot.slane %v1539, 2
      %v1634 = vrot.slane %v1540, 2
      %v1635 = vsel %vm1051, %v1633, %v1634
      %v1636 = vsel %vm1051, %v1634, %v1579
      %v1637 = vrot.slane %v1541, 2
      %v1638 = vrot.slane %v1542, 2
      %v1639 = vsel %vm1051, %v1637, %v1638
      %v1640 = vsel %vm1051, %v1638, %v1579
      %v1689 = vadd.f32 %v1458, %v1576
      %v1690 = vadd.f32 %v1459, %v1578
      %v1691 = vadd.f32 %v1460, %v1580
      %v1692 = vadd.f32 %v1461, %v1581
      %v1693 = vadd.f32 %v1462, %v1583
      %v1694 = vadd.f32 %v1463, %v1584
      %v1695 = vadd.f32 %v1464, %v1585
      %v1696 = vadd.f32 %v1465, %v1587
      %v1697 = vadd.f32 %v1466, %v1588
      %v1698 = vadd.f32 %v1467, %v1589
      %v1699 = vadd.f32 %v1468, %v1591
      %v1700 = vadd.f32 %v1469, %v1592
      %v1701 = vadd.f32 %v1470, %v1593
      %v1702 = vadd.f32 %v1471, %v1595
      %v1703 = vadd.f32 %v1472, %v1596
      %v1704 = vadd.f32 %v1473, %v1597
      %v1705 = vadd.f32 %v1474, %v1599
      %v1706 = vadd.f32 %v1475, %v1600
      %v1707 = vadd.f32 %v1476, %v1601
      %v1708 = vadd.f32 %v1477, %v1603
      %v1709 = vadd.f32 %v1478, %v1604
      %v1710 = vadd.f32 %v1479, %v1605
      %v1711 = vadd.f32 %v1480, %v1607
      %v1712 = vadd.f32 %v1481, %v1608
      %v1713 = vadd.f32 %v1482, %v1609
      %v1714 = vadd.f32 %v1483, %v1611
      %v1715 = vadd.f32 %v1484, %v1612
      %v1716 = vadd.f32 %v1485, %v1613
      %v1717 = vadd.f32 %v1486, %v1615
      %v1718 = vadd.f32 %v1487, %v1616
      %v1719 = vadd.f32 %v1488, %v1617
      %v1720 = vadd.f32 %v1489, %v1619
      %v1721 = vadd.f32 %v1490, %v1620
      %v1722 = vadd.f32 %v1491, %v1621
      %v1723 = vadd.f32 %v1492, %v1623
      %v1724 = vadd.f32 %v1493, %v1624
      %v1725 = vadd.f32 %v1494, %v1625
      %v1726 = vadd.f32 %v1495, %v1627
      %v1727 = vadd.f32 %v1496, %v1628
      %v1728 = vadd.f32 %v1497, %v1629
      %v1729 = vadd.f32 %v1498, %v1631
      %v1730 = vadd.f32 %v1499, %v1632
      %v1731 = vadd.f32 %v1500, %v1633
      %v1732 = vadd.f32 %v1501, %v1635
      %v1733 = vadd.f32 %v1502, %v1636
      %v1734 = vadd.f32 %v1503, %v1637
      %v1735 = vadd.f32 %v1504, %v1639
      %v1736 = vadd.f32 %v1505, %v1640
      %v1737 = vlaneseq
      %v1738 = vshrl.u32 %v1737, 7
      %v1739 = vsub.s32 6, %v1738
      %v1740 = vrot.slane %v709, %v1739
      %v1741 = vmul.f32 %v1740, 0.0
      %v1742 = vmul.f32 %v679, %v1740
      %v1743 = vmul.f32 %v680, %v1740
      %v1744 = vmul.f32 %v681, %v1740
      %v1745 = vmul.f32 %v682, %v1740
      %v1746 = vmul.f32 %v683, %v1740
      %v1747 = vmul.f32 %v684, %v1740
      %v1748 = vmul.f32 %v685, %v1740
      %v1749 = vmul.f32 %v686, %v1740
      %v1750 = vmul.f32 %v687, %v1740
      %v1751 = vmul.f32 %v688, %v1740
      %v1752 = vmul.f32 %v689, %v1740
      %v1753 = vmul.f32 %v690, %v1740
      %v1754 = vmul.f32 %v691, %v1740
      %v1755 = vmul.f32 %v692, %v1740
      %v1756 = vmul.f32 %v693, %v1740
      %v1757 = vmul.f32 %v694, %v1740
      %v1758 = vmul.f32 %v695, %v1740
      %v1759 = vmul.f32 %v696, %v1740
      %v1760 = vmul.f32 %v697, %v1740
      %v1761 = vmul.f32 %v698, %v1740
      %v1762 = vmul.f32 %v699, %v1740
      %v1763 = vmul.f32 %v700, %v1740
      %v1764 = vmul.f32 %v701, %v1740
      %v1765 = vmul.f32 %v702, %v1740
      %v1766 = vmul.f32 %v703, %v1740
      %v1767 = vmul.f32 %v704, %v1740
      %v1768 = vmul.f32 %v705, %v1740
      %v1769 = vmul.f32 %v706, %v1740
      %v1770 = vmul.f32 %v707, %v1740
      %v1771 = vmul.f32 %v708, %v1740
      %v1772 = vadd.f32 %v1689, %v1741
      %v1773 = vadd.f32 %v1690, %v1742
      %v1774 = vadd.f32 %v1691, %v1743
      %v1775 = vadd.f32 %v1692, %v1741
      %v1776 = vadd.f32 %v1693, %v1744
      %v1777 = vadd.f32 %v1694, %v1745
      %v1778 = vadd.f32 %v1695, %v1741
      %v1779 = vadd.f32 %v1696, %v1746
      %v1780 = vadd.f32 %v1697, %v1747
      %v1781 = vadd.f32 %v1698, %v1741
      %v1782 = vadd.f32 %v1699, %v1748
      %v1783 = vadd.f32 %v1700, %v1749
      %v1784 = vadd.f32 %v1701, %v1741
      %v1785 = vadd.f32 %v1702, %v1750
      %v1786 = vadd.f32 %v1703, %v1751
      %v1787 = vadd.f32 %v1704, %v1741
      %v1788 = vadd.f32 %v1705, %v1752
      %v1789 = vadd.f32 %v1706, %v1753
      %v1790 = vadd.f32 %v1707, %v1741
      %v1791 = vadd.f32 %v1708, %v1754
      %v1792 = vadd.f32 %v1709, %v1755
      %v1793 = vadd.f32 %v1710, %v1741
      %v1794 = vadd.f32 %v1711, %v1756
      %v1795 = vadd.f32 %v1712, %v1757
      %v1796 = vadd.f32 %v1713, %v1741
      %v1797 = vadd.f32 %v1714, %v1758
      %v1798 = vadd.f32 %v1715, %v1759
      %v1799 = vadd.f32 %v1716, %v1741
      %v1800 = vadd.f32 %v1717, %v1760
      %v1801 = vadd.f32 %v1718, %v1761
      %v1802 = vadd.f32 %v1719, %v1741
      %v1803 = vadd.f32 %v1720, %v1762
      %v1804 = vadd.f32 %v1721, %v1763
      %v1805 = vadd.f32 %v1722, %v1741
      %v1806 = vadd.f32 %v1723, %v1764
      %v1807 = vadd.f32 %v1724, %v1765
      %v1808 = vadd.f32 %v1725, %v1741
      %v1809 = vadd.f32 %v1726, %v1766
      %v1810 = vadd.f32 %v1727, %v1767
      %v1811 = vadd.f32 %v1728, %v1741
      %v1812 = vadd.f32 %v1729, %v1768
      %v1813 = vadd.f32 %v1730, %v1769
      %v1814 = vadd.f32 %v1731, %v1741
      %v1815 = vadd.f32 %v1732, %v1770
      %v1816 = vadd.f32 %v1733, %v1771
      %v1817 = vadd.f32 %v1734, %v1741
      %v1818 = vadd.f32 %v1735, %v1741
      %v1819 = vadd.f32 %v1736, %v1741
      %v1820 = vlaneseq
      %v1821 = vshrl.u32 %v1820, 7
      %v1822 = vsub.s32 7, %v1821
      %v1823 = vrot.slane %v709, %v1822
      %v1824 = vmul.f32 %v679, %v1823
      %v1825 = vmul.f32 %v680, %v1823
      %v1826 = vmul.f32 %v681, %v1823
      %v1827 = vmul.f32 %v682, %v1823
      %v1828 = vmul.f32 %v683, %v1823
      %v1829 = vmul.f32 %v684, %v1823
      %v1830 = vmul.f32 %v685, %v1823
      %v1831 = vmul.f32 %v686, %v1823
      %v1832 = vmul.f32 %v687, %v1823
      %v1833 = vmul.f32 %v688, %v1823
      %v1834 = vmul.f32 %v689, %v1823
      %v1835 = vmul.f32 %v690, %v1823
      %v1836 = vmul.f32 %v691, %v1823
      %v1837 = vmul.f32 %v692, %v1823
      %v1838 = vmul.f32 %v693, %v1823
      %v1839 = vmul.f32 %v694, %v1823
      %v1840 = vmul.f32 %v695, %v1823
      %v1841 = vmul.f32 %v696, %v1823
      %v1842 = vmul.f32 %v697, %v1823
      %v1843 = vmul.f32 %v698, %v1823
      %v1844 = vmul.f32 %v699, %v1823
      %v1845 = vmul.f32 %v700, %v1823
      %v1846 = vmul.f32 %v701, %v1823
      %v1847 = vmul.f32 %v702, %v1823
      %v1848 = vmul.f32 %v703, %v1823
      %v1849 = vmul.f32 %v704, %v1823
      %v1850 = vmul.f32 %v705, %v1823
      %v1851 = vmul.f32 %v706, %v1823
      %v1852 = vmul.f32 %v707, %v1823
      %v1853 = vmul.f32 %v708, %v1823
      %v1854 = vmul.f32 %v1823, 0.0
      %v1886 = vrot.slane %v1824, 1
      %v1887 = vrot.slane %v1825, 1
      %v1888 = vsel %vm843, %v1886, %v1887
      %v1889 = vrot.slane %v1826, 1
      %v1890 = vrot.slane %v1827, 1
      %v1891 = vsel %vm843, %v1889, %v1890
      %v1892 = vrot.slane %v1828, 1
      %v1893 = vrot.slane %v1829, 1
      %v1894 = vsel %vm843, %v1892, %v1893
      %v1895 = vrot.slane %v1830, 1
      %v1896 = vrot.slane %v1831, 1
      %v1897 = vsel %vm843, %v1895, %v1896
      %v1898 = vrot.slane %v1832, 1
      %v1899 = vrot.slane %v1833, 1
      %v1900 = vsel %vm843, %v1898, %v1899
      %v1901 = vrot.slane %v1834, 1
      %v1902 = vrot.slane %v1835, 1
      %v1903 = vsel %vm843, %v1901, %v1902
      %v1904 = vrot.slane %v1836, 1
      %v1905 = vrot.slane %v1837, 1
      %v1906 = vsel %vm843, %v1904, %v1905
      %v1907 = vrot.slane %v1838, 1
      %v1908 = vrot.slane %v1839, 1
      %v1909 = vsel %vm843, %v1907, %v1908
      %v1910 = vrot.slane %v1840, 1
      %v1911 = vrot.slane %v1841, 1
      %v1912 = vsel %vm843, %v1910, %v1911
      %v1913 = vrot.slane %v1842, 1
      %v1914 = vrot.slane %v1843, 1
      %v1915 = vsel %vm843, %v1913, %v1914
      %v1916 = vrot.slane %v1844, 1
      %v1917 = vrot.slane %v1845, 1
      %v1918 = vsel %vm843, %v1916, %v1917
      %v1919 = vrot.slane %v1846, 1
      %v1920 = vrot.slane %v1847, 1
      %v1921 = vsel %vm843, %v1919, %v1920
      %v1922 = vrot.slane %v1848, 1
      %v1923 = vrot.slane %v1849, 1
      %v1924 = vsel %vm843, %v1922, %v1923
      %v1925 = vrot.slane %v1850, 1
      %v1926 = vrot.slane %v1851, 1
      %v1927 = vsel %vm843, %v1925, %v1926
      %v1928 = vrot.slane %v1852, 1
      %v1929 = vrot.slane %v1853, 1
      %v1930 = vsel %vm843, %v1928, %v1929
      %v1931 = vrot.slane %v1854, 1
      %v1932 = vsel %vm843, %v1931, %v1931
      %v1980 = vadd.f32 %v1772, %v1886
      %v1981 = vadd.f32 %v1773, %v1888
      %v1982 = vadd.f32 %v1774, %v1887
      %v1983 = vadd.f32 %v1775, %v1889
      %v1984 = vadd.f32 %v1776, %v1891
      %v1985 = vadd.f32 %v1777, %v1890
      %v1986 = vadd.f32 %v1778, %v1892
      %v1987 = vadd.f32 %v1779, %v1894
      %v1988 = vadd.f32 %v1780, %v1893
      %v1989 = vadd.f32 %v1781, %v1895
      %v1990 = vadd.f32 %v1782, %v1897
      %v1991 = vadd.f32 %v1783, %v1896
      %v1992 = vadd.f32 %v1784, %v1898
      %v1993 = vadd.f32 %v1785, %v1900
      %v1994 = vadd.f32 %v1786, %v1899
      %v1995 = vadd.f32 %v1787, %v1901
      %v1996 = vadd.f32 %v1788, %v1903
      %v1997 = vadd.f32 %v1789, %v1902
      %v1998 = vadd.f32 %v1790, %v1904
      %v1999 = vadd.f32 %v1791, %v1906
      %v2000 = vadd.f32 %v1792, %v1905
      %v2001 = vadd.f32 %v1793, %v1907
      %v2002 = vadd.f32 %v1794, %v1909
      %v2003 = vadd.f32 %v1795, %v1908
      %v2004 = vadd.f32 %v1796, %v1910
      %v2005 = vadd.f32 %v1797, %v1912
      %v2006 = vadd.f32 %v1798, %v1911
      %v2007 = vadd.f32 %v1799, %v1913
      %v2008 = vadd.f32 %v1800, %v1915
      %v2009 = vadd.f32 %v1801, %v1914
      %v2010 = vadd.f32 %v1802, %v1916
      %v2011 = vadd.f32 %v1803, %v1918
      %v2012 = vadd.f32 %v1804, %v1917
      %v2013 = vadd.f32 %v1805, %v1919
      %v2014 = vadd.f32 %v1806, %v1921
      %v2015 = vadd.f32 %v1807, %v1920
      %v2016 = vadd.f32 %v1808, %v1922
      %v2017 = vadd.f32 %v1809, %v1924
      %v2018 = vadd.f32 %v1810, %v1923
      %v2019 = vadd.f32 %v1811, %v1925
      %v2020 = vadd.f32 %v1812, %v1927
      %v2021 = vadd.f32 %v1813, %v1926
      %v2022 = vadd.f32 %v1814, %v1928
      %v2023 = vadd.f32 %v1815, %v1930
      %v2024 = vadd.f32 %v1816, %v1929
      %v2025 = vadd.f32 %v1817, %v1931
      %v2026 = vadd.f32 %v1818, %v1932
      %v2027 = vadd.f32 %v1819, %v1931
      %v2028 = vlaneseq
      %v2029 = vshrl.u32 %v2028, 7
      %v2030 = vsub.s32 0, %v2029
      %v2031 = vrot.slane %v710, %v2030
      %v2032 = vmul.f32 %v679, %v2031
      %v2033 = vmul.f32 %v680, %v2031
      %v2034 = vmul.f32 %v2031, 0.0
      %v2035 = vmul.f32 %v681, %v2031
      %v2036 = vmul.f32 %v682, %v2031
      %v2037 = vmul.f32 %v683, %v2031
      %v2038 = vmul.f32 %v684, %v2031
      %v2039 = vmul.f32 %v685, %v2031
      %v2040 = vmul.f32 %v686, %v2031
      %v2041 = vmul.f32 %v687, %v2031
      %v2042 = vmul.f32 %v688, %v2031
      %v2043 = vmul.f32 %v689, %v2031
      %v2044 = vmul.f32 %v690, %v2031
      %v2045 = vmul.f32 %v691, %v2031
      %v2046 = vmul.f32 %v692, %v2031
      %v2047 = vmul.f32 %v693, %v2031
      %v2048 = vmul.f32 %v694, %v2031
      %v2049 = vmul.f32 %v695, %v2031
      %v2050 = vmul.f32 %v696, %v2031
      %v2051 = vmul.f32 %v697, %v2031
      %v2052 = vmul.f32 %v698, %v2031
      %v2053 = vmul.f32 %v699, %v2031
      %v2054 = vmul.f32 %v700, %v2031
      %v2055 = vmul.f32 %v701, %v2031
      %v2056 = vmul.f32 %v702, %v2031
      %v2057 = vmul.f32 %v703, %v2031
      %v2058 = vmul.f32 %v704, %v2031
      %v2059 = vmul.f32 %v705, %v2031
      %v2060 = vmul.f32 %v706, %v2031
      %v2061 = vmul.f32 %v707, %v2031
      %v2062 = vmul.f32 %v708, %v2031
      %v2094 = vrot.slane %v2032, 2
      %v2095 = vrot.slane %v2033, 2
      %v2096 = vsel %vm1051, %v2094, %v2095
      %v2097 = vrot.slane %v2034, 2
      %v2098 = vsel %vm1051, %v2095, %v2097
      %v2099 = vrot.slane %v2035, 2
      %v2100 = vrot.slane %v2036, 2
      %v2101 = vsel %vm1051, %v2099, %v2100
      %v2102 = vsel %vm1051, %v2100, %v2097
      %v2103 = vrot.slane %v2037, 2
      %v2104 = vrot.slane %v2038, 2
      %v2105 = vsel %vm1051, %v2103, %v2104
      %v2106 = vsel %vm1051, %v2104, %v2097
      %v2107 = vrot.slane %v2039, 2
      %v2108 = vrot.slane %v2040, 2
      %v2109 = vsel %vm1051, %v2107, %v2108
      %v2110 = vsel %vm1051, %v2108, %v2097
      %v2111 = vrot.slane %v2041, 2
      %v2112 = vrot.slane %v2042, 2
      %v2113 = vsel %vm1051, %v2111, %v2112
      %v2114 = vsel %vm1051, %v2112, %v2097
      %v2115 = vrot.slane %v2043, 2
      %v2116 = vrot.slane %v2044, 2
      %v2117 = vsel %vm1051, %v2115, %v2116
      %v2118 = vsel %vm1051, %v2116, %v2097
      %v2119 = vrot.slane %v2045, 2
      %v2120 = vrot.slane %v2046, 2
      %v2121 = vsel %vm1051, %v2119, %v2120
      %v2122 = vsel %vm1051, %v2120, %v2097
      %v2123 = vrot.slane %v2047, 2
      %v2124 = vrot.slane %v2048, 2
      %v2125 = vsel %vm1051, %v2123, %v2124
      %v2126 = vsel %vm1051, %v2124, %v2097
      %v2127 = vrot.slane %v2049, 2
      %v2128 = vrot.slane %v2050, 2
      %v2129 = vsel %vm1051, %v2127, %v2128
      %v2130 = vsel %vm1051, %v2128, %v2097
      %v2131 = vrot.slane %v2051, 2
      %v2132 = vrot.slane %v2052, 2
      %v2133 = vsel %vm1051, %v2131, %v2132
      %v2134 = vsel %vm1051, %v2132, %v2097
      %v2135 = vrot.slane %v2053, 2
      %v2136 = vrot.slane %v2054, 2
      %v2137 = vsel %vm1051, %v2135, %v2136
      %v2138 = vsel %vm1051, %v2136, %v2097
      %v2139 = vrot.slane %v2055, 2
      %v2140 = vrot.slane %v2056, 2
      %v2141 = vsel %vm1051, %v2139, %v2140
      %v2142 = vsel %vm1051, %v2140, %v2097
      %v2143 = vrot.slane %v2057, 2
      %v2144 = vrot.slane %v2058, 2
      %v2145 = vsel %vm1051, %v2143, %v2144
      %v2146 = vsel %vm1051, %v2144, %v2097
      %v2147 = vrot.slane %v2059, 2
      %v2148 = vrot.slane %v2060, 2
      %v2149 = vsel %vm1051, %v2147, %v2148
      %v2150 = vsel %vm1051, %v2148, %v2097
      %v2151 = vrot.slane %v2061, 2
      %v2152 = vrot.slane %v2062, 2
      %v2153 = vsel %vm1051, %v2151, %v2152
      %v2154 = vsel %vm1051, %v2152, %v2097
      %v2155 = vsel %vm1051, %v2097, %v2097
      %v2203 = vadd.f32 %v1980, %v2094
      %v2204 = vadd.f32 %v1981, %v2096
      %v2205 = vadd.f32 %v1982, %v2098
      %v2206 = vadd.f32 %v1983, %v2099
      %v2207 = vadd.f32 %v1984, %v2101
      %v2208 = vadd.f32 %v1985, %v2102
      %v2209 = vadd.f32 %v1986, %v2103
      %v2210 = vadd.f32 %v1987, %v2105
      %v2211 = vadd.f32 %v1988, %v2106
      %v2212 = vadd.f32 %v1989, %v2107
      %v2213 = vadd.f32 %v1990, %v2109
      %v2214 = vadd.f32 %v1991, %v2110
      %v2215 = vadd.f32 %v1992, %v2111
      %v2216 = vadd.f32 %v1993, %v2113
      %v2217 = vadd.f32 %v1994, %v2114
      %v2218 = vadd.f32 %v1995, %v2115
      %v2219 = vadd.f32 %v1996, %v2117
      %v2220 = vadd.f32 %v1997, %v2118
      %v2221 = vadd.f32 %v1998, %v2119
      %v2222 = vadd.f32 %v1999, %v2121
      %v2223 = vadd.f32 %v2000, %v2122
      %v2224 = vadd.f32 %v2001, %v2123
      %v2225 = vadd.f32 %v2002, %v2125
      %v2226 = vadd.f32 %v2003, %v2126
      %v2227 = vadd.f32 %v2004, %v2127
      %v2228 = vadd.f32 %v2005, %v2129
      %v2229 = vadd.f32 %v2006, %v2130
      %v2230 = vadd.f32 %v2007, %v2131
      %v2231 = vadd.f32 %v2008, %v2133
      %v2232 = vadd.f32 %v2009, %v2134
      %v2233 = vadd.f32 %v2010, %v2135
      %v2234 = vadd.f32 %v2011, %v2137
      %v2235 = vadd.f32 %v2012, %v2138
      %v2236 = vadd.f32 %v2013, %v2139
      %v2237 = vadd.f32 %v2014, %v2141
      %v2238 = vadd.f32 %v2015, %v2142
      %v2239 = vadd.f32 %v2016, %v2143
      %v2240 = vadd.f32 %v2017, %v2145
      %v2241 = vadd.f32 %v2018, %v2146
      %v2242 = vadd.f32 %v2019, %v2147
      %v2243 = vadd.f32 %v2020, %v2149
      %v2244 = vadd.f32 %v2021, %v2150
      %v2245 = vadd.f32 %v2022, %v2151
      %v2246 = vadd.f32 %v2023, %v2153
      %v2247 = vadd.f32 %v2024, %v2154
      %v2248 = vadd.f32 %v2025, %v2097
      %v2249 = vadd.f32 %v2026, %v2155
      %v2250 = vadd.f32 %v2027, %v2155
      %v2251 = vld [vmem:[%s4] sm:$0x1]
      %v2253 = vlaneseq
      %v2254 = vshrl.u32 %v2253, 7
      %v2255 = vsub.s32 0, %v2254
      %v2256 = vrot.slane %v2251, %v2255
      %v2258 = vadd.f32 %v2203, %v2256
      %v2259 = vadd.f32 %v2204, %v2256
      %v2260 = vadd.f32 %v2205, %v2256
      %v2261 = vadd.f32 %v2206, %v2256
      %v2262 = vadd.f32 %v2207, %v2256
      %v2263 = vadd.f32 %v2208, %v2256
      %v2264 = vadd.f32 %v2209, %v2256
      %v2265 = vadd.f32 %v2210, %v2256
      %v2266 = vadd.f32 %v2211, %v2256
      %v2267 = vadd.f32 %v2212, %v2256
      %v2268 = vadd.f32 %v2213, %v2256
      %v2269 = vadd.f32 %v2214, %v2256
      %v2270 = vadd.f32 %v2215, %v2256
      %v2271 = vadd.f32 %v2216, %v2256
      %v2272 = vadd.f32 %v2217, %v2256
      %v2273 = vadd.f32 %v2218, %v2256
      %v2274 = vadd.f32 %v2219, %v2256
      %v2275 = vadd.f32 %v2220, %v2256
      %v2276 = vadd.f32 %v2221, %v2256
      %v2277 = vadd.f32 %v2222, %v2256
      %v2278 = vadd.f32 %v2223, %v2256
      %v2279 = vadd.f32 %v2224, %v2256
      %v2280 = vadd.f32 %v2225, %v2256
      %v2281 = vadd.f32 %v2226, %v2256
      %v2282 = vadd.f32 %v2227, %v2256
      %v2283 = vadd.f32 %v2228, %v2256
      %v2284 = vadd.f32 %v2229, %v2256
      %v2285 = vadd.f32 %v2230, %v2256
      %v2286 = vadd.f32 %v2231, %v2256
      %v2287 = vadd.f32 %v2232, %v2256
      %v2288 = vadd.f32 %v2233, %v2256
      %v2289 = vadd.f32 %v2234, %v2256
      %v2290 = vadd.f32 %v2235, %v2256
      %v2291 = vadd.f32 %v2236, %v2256
      %v2292 = vadd.f32 %v2237, %v2256
      %v2293 = vadd.f32 %v2238, %v2256
      %v2294 = vadd.f32 %v2239, %v2256
      %v2295 = vadd.f32 %v2240, %v2256
      %v2296 = vadd.f32 %v2241, %v2256
      %v2297 = vadd.f32 %v2242, %v2256
      %v2298 = vadd.f32 %v2243, %v2256
      %v2299 = vadd.f32 %v2244, %v2256
      %v2300 = vadd.f32 %v2245, %v2256
      %v2301 = vadd.f32 %v2246, %v2256
      %v2302 = vadd.f32 %v2247, %v2256
      %v2303 = vadd.f32 %v2248, %v2256
      %v2304 = vadd.f32 %v2249, %v2256
      %v2305 = vadd.f32 %v2250, %v2256
      %v2306 = vmax.f32 %v2258, 0.0
      %v2307 = vmax.f32 %v2259, 0.0
      %v2308 = vmax.f32 %v2260, 0.0
      %v2309 = vmax.f32 %v2261, 0.0
      %v2310 = vmax.f32 %v2262, 0.0
      %v2311 = vmax.f32 %v2263, 0.0
      %v2312 = vmax.f32 %v2264, 0.0
      %v2313 = vmax.f32 %v2265, 0.0
      %v2314 = vmax.f32 %v2266, 0.0
      %v2315 = vmax.f32 %v2267, 0.0
      %v2316 = vmax.f32 %v2268, 0.0
      %v2317 = vmax.f32 %v2269, 0.0
      %v2318 = vmax.f32 %v2270, 0.0
      %v2319 = vmax.f32 %v2271, 0.0
      %v2320 = vmax.f32 %v2272, 0.0
      %v2321 = vmax.f32 %v2273, 0.0
      %v2322 = vmax.f32 %v2274, 0.0
      %v2323 = vmax.f32 %v2275, 0.0
      %v2324 = vmax.f32 %v2276, 0.0
      %v2325 = vmax.f32 %v2277, 0.0
      %v2326 = vmax.f32 %v2278, 0.0
      %v2327 = vmax.f32 %v2279, 0.0
      %v2328 = vmax.f32 %v2280, 0.0
      %v2329 = vmax.f32 %v2281, 0.0
      %v2330 = vmax.f32 %v2282, 0.0
      %v2331 = vmax.f32 %v2283, 0.0
      %v2332 = vmax.f32 %v2284, 0.0
      %v2333 = vmax.f32 %v2285, 0.0
      %v2334 = vmax.f32 %v2286, 0.0
      %v2335 = vmax.f32 %v2287, 0.0
      %v2336 = vmax.f32 %v2288, 0.0
      %v2337 = vmax.f32 %v2289, 0.0
      %v2338 = vmax.f32 %v2290, 0.0
      %v2339 = vmax.f32 %v2291, 0.0
      %v2340 = vmax.f32 %v2292, 0.0
      %v2341 = vmax.f32 %v2293, 0.0
      %v2342 = vmax.f32 %v2294, 0.0
      %v2343 = vmax.f32 %v2295, 0.0
      %v2344 = vmax.f32 %v2296, 0.0
      %v2345 = vmax.f32 %v2297, 0.0
      %v2346 = vmax.f32 %v2298, 0.0
      %v2347 = vmax.f32 %v2299, 0.0
      %v2348 = vmax.f32 %v2300, 0.0
      %v2349 = vmax.f32 %v2301, 0.0
      %v2350 = vmax.f32 %v2302, 0.0
      %v2351 = vmax.f32 %v2303, 0.0
      %v2352 = vmax.f32 %v2304, 0.0
      %v2353 = vmax.f32 %v2305, 0.0
      %v2354 = vmin.f32 %v2306, 6.0
      %v2355 = vmin.f32 %v2307, 6.0
      %v2356 = vmin.f32 %v2308, 6.0
      %v2357 = vmin.f32 %v2309, 6.0
      %v2358 = vmin.f32 %v2310, 6.0
      %v2359 = vmin.f32 %v2311, 6.0
      %v2360 = vmin.f32 %v2312, 6.0
      %v2361 = vmin.f32 %v2313, 6.0
      %v2362 = vmin.f32 %v2314, 6.0
      %v2363 = vmin.f32 %v2315, 6.0
      %v2364 = vmin.f32 %v2316, 6.0
      %v2365 = vmin.f32 %v2317, 6.0
      %v2366 = vmin.f32 %v2318, 6.0
      %v2367 = vmin.f32 %v2319, 6.0
      %v2368 = vmin.f32 %v2320, 6.0
      %v2369 = vmin.f32 %v2321, 6.0
      %v2370 = vmin.f32 %v2322, 6.0
      %v2371 = vmin.f32 %v2323, 6.0
      %v2372 = vmin.f32 %v2324, 6.0
      %v2373 = vmin.f32 %v2325, 6.0
      %v2374 = vmin.f32 %v2326, 6.0
      %v2375 = vmin.f32 %v2327, 6.0
      %v2376 = vmin.f32 %v2328, 6.0
      %v2377 = vmin.f32 %v2329, 6.0
      %v2378 = vmin.f32 %v2330, 6.0
      %v2379 = vmin.f32 %v2331, 6.0
      %v2380 = vmin.f32 %v2332, 6.0
      %v2381 = vmin.f32 %v2333, 6.0
      %v2382 = vmin.f32 %v2334, 6.0
      %v2383 = vmin.f32 %v2335, 6.0
      %v2384 = vmin.f32 %v2336, 6.0
      %v2385 = vmin.f32 %v2337, 6.0
      %v2386 = vmin.f32 %v2338, 6.0
      %v2387 = vmin.f32 %v2339, 6.0
      %v2388 = vmin.f32 %v2340, 6.0
      %v2389 = vmin.f32 %v2341, 6.0
      %v2390 = vmin.f32 %v2342, 6.0
      %v2391 = vmin.f32 %v2343, 6.0
      %v2392 = vmin.f32 %v2344, 6.0
      %v2393 = vmin.f32 %v2345, 6.0
      %v2394 = vmin.f32 %v2346, 6.0
      %v2395 = vmin.f32 %v2347, 6.0
      %v2396 = vmin.f32 %v2348, 6.0
      %v2397 = vmin.f32 %v2349, 6.0
      %v2398 = vmin.f32 %v2350, 6.0
      %v2399 = vmin.f32 %v2351, 6.0
      %v2400 = vmin.f32 %v2352, 6.0
      %v2401 = vmin.f32 %v2353, 6.0
      %vm2450 = vcmask 1040384
      %v2451 = vrot.slane %v2354, 7
      %v2452 = vrot.slane %v2355, 7
      %v2453 = vsel %vm2450, %v2451, %v2452
      %v2454 = vrot.slane %v2356, 7
      %v2455 = vsel %vm2450, %v2452, %v2454
      %v2456 = vrot.slane %v2357, 7
      %v2457 = vrot.slane %v2358, 7
      %v2458 = vsel %vm2450, %v2456, %v2457
      %v2459 = vrot.slane %v2359, 7
      %v2460 = vsel %vm2450, %v2457, %v2459
      %v2461 = vrot.slane %v2360, 7
      %v2462 = vrot.slane %v2361, 7
      %v2463 = vsel %vm2450, %v2461, %v2462
      %v2464 = vrot.slane %v2362, 7
      %v2465 = vsel %vm2450, %v2462, %v2464
      %v2466 = vrot.slane %v2363, 7
      %v2467 = vrot.slane %v2364, 7
      %v2468 = vsel %vm2450, %v2466, %v2467
      %v2469 = vrot.slane %v2365, 7
      %v2470 = vsel %vm2450, %v2467, %v2469
      %v2471 = vrot.slane %v2366, 7
      %v2472 = vrot.slane %v2367, 7
      %v2473 = vsel %vm2450, %v2471, %v2472
      %v2474 = vrot.slane %v2368, 7
      %v2475 = vsel %vm2450, %v2472, %v2474
      %v2476 = vrot.slane %v2369, 7
      %v2477 = vrot.slane %v2370, 7
      %v2478 = vsel %vm2450, %v2476, %v2477
      %v2479 = vrot.slane %v2371, 7
      %v2480 = vsel %vm2450, %v2477, %v2479
      %v2481 = vrot.slane %v2372, 7
      %v2482 = vrot.slane %v2373, 7
      %v2483 = vsel %vm2450, %v2481, %v2482
      %v2484 = vrot.slane %v2374, 7
      %v2485 = vsel %vm2450, %v2482, %v2484
      %v2486 = vrot.slane %v2375, 7
      %v2487 = vrot.slane %v2376, 7
      %v2488 = vsel %vm2450, %v2486, %v2487
      %v2489 = vrot.slane %v2377, 7
      %v2490 = vsel %vm2450, %v2487, %v2489
      %v2491 = vrot.slane %v2378, 7
      %v2492 = vrot.slane %v2379, 7
      %v2493 = vsel %vm2450, %v2491, %v2492
      %v2494 = vrot.slane %v2380, 7
      %v2495 = vsel %vm2450, %v2492, %v2494
      %v2496 = vrot.slane %v2381, 7
      %v2497 = vrot.slane %v2382, 7
      %v2498 = vsel %vm2450, %v2496, %v2497
      %v2499 = vrot.slane %v2383, 7
      %v2500 = vsel %vm2450, %v2497, %v2499
      %v2501 = vrot.slane %v2384, 7
      %v2502 = vrot.slane %v2385, 7
      %v2503 = vsel %vm2450, %v2501, %v2502
      %v2504 = vrot.slane %v2386, 7
      %v2505 = vsel %vm2450, %v2502, %v2504
      %v2506 = vrot.slane %v2387, 7
      %v2507 = vrot.slane %v2388, 7
      %v2508 = vsel %vm2450, %v2506, %v2507
      %v2509 = vrot.slane %v2389, 7
      %v2510 = vsel %vm2450, %v2507, %v2509
      %v2511 = vrot.slane %v2390, 7
      %v2512 = vrot.slane %v2391, 7
      %v2513 = vsel %vm2450, %v2511, %v2512
      %v2514 = vrot.slane %v2392, 7
      %v2515 = vsel %vm2450, %v2512, %v2514
      %v2516 = vrot.slane %v2393, 7
      %v2517 = vrot.slane %v2394, 7
      %v2518 = vsel %vm2450, %v2516, %v2517
      %v2519 = vrot.slane %v2395, 7
      %v2520 = vsel %vm2450, %v2517, %v2519
      %v2521 = vrot.slane %v2396, 7
      %v2522 = vrot.slane %v2397, 7
      %v2523 = vsel %vm2450, %v2521, %v2522
      %v2524 = vrot.slane %v2398, 7
      %v2525 = vsel %vm2450, %v2522, %v2524
      %v2526 = vrot.slane %v2399, 7
      %v2527 = vrot.slane %v2400, 7
      %v2528 = vsel %vm2450, %v2526, %v2527
      %v2529 = vrot.slane %v2401, 7
      %v2530 = vsel %vm2450, %v2527, %v2529
      %v2531 = vld [vmem:[%s5] sm:$0xff]
      %v2532 = vld [vmem:[%s5 + $0x8] sm:$0xff]
      %v2533 = vld [vmem:[%s5 + $0x10] sm:$0xff]
      %v2534 = vld [vmem:[%s6] sm:$0x1]
      %v2536 = vlaneseq
      %v2537 = vshrl.u32 %v2536, 7
      %v2538 = vsub.s32 0, %v2537
      %v2539 = vrot.slane %v2534, %v2538
      %vm2541 = vcmask 195584
      %v2542 = vsel %vm2541, %v2453, 0
      %v2544 = vsel %vm2541, %v2455, 0
      %v2546 = vsel %vm2541, %v2458, 0
      %v2548 = vsel %vm2541, %v2460, 0
      %v2550 = vsel %vm2541, %v2463, 0
      %v2552 = vsel %vm2541, %v2465, 0
      %v2554 = vsel %vm2541, %v2468, 0
      %v2556 = vsel %vm2541, %v2470, 0
      %v2558 = vsel %vm2541, %v2473, 0
      %v2560 = vsel %vm2541, %v2475, 0
      %v2562 = vsel %vm2541, %v2478, 0
      %v2564 = vsel %vm2541, %v2480, 0
      %v2566 = vsel %vm2541, %v2483, 0
      %v2568 = vsel %vm2541, %v2485, 0
      %v2570 = vsel %vm2541, %v2488, 0
      %v2572 = vsel %vm2541, %v2490, 0
      %v2574 = vsel %vm2541, %v2493, 0
      %v2576 = vsel %vm2541, %v2495, 0
      %v2578 = vsel %vm2541, %v2498, 0
      %v2580 = vsel %vm2541, %v2500, 0
      %v2582 = vsel %vm2541, %v2503, 0
      %v2584 = vsel %vm2541, %v2505, 0
      %v2586 = vsel %vm2541, %v2508, 0
      %v2588 = vsel %vm2541, %v2510, 0
      %v2590 = vsel %vm2541, %v2513, 0
      %v2592 = vsel %vm2541, %v2515, 0
      %v2594 = vsel %vm2541, %v2518, 0
      %v2596 = vsel %vm2541, %v2520, 0
      %v2598 = vsel %vm2541, %v2523, 0
      %v2600 = vsel %vm2541, %v2525, 0
      %v2602 = vsel %vm2541, %v2528, 0
      %v2604 = vsel %vm2541, %v2530, 0
      %2606 = vmatprep.subr.mxu0 0.0
      %2607 = vmatpush1.msra.mxu0 %v2531
      %2608 = vmatprep.subr.mxu0 0.0
      %2609 = vmatpush1.msra.mxu0 %v2532
      %2610 = vmatprep.subr.mxu0 0.0
      %2611 = vmatpush1.msra.mxu0 %v2533
      %2612 = vmatprep.subr.mxu0 0.0
      %2613 = vmatpush1.msra.mxu0 0.0
      %2614 = vmatprep.subr.mxu0 0.0
      %2615 = vmatpush1.msra.mxu0 0.0
      %2616 = vmatprep.subr.mxu0 0.0
      %2617 = vmatpush1.msra.mxu0 0.0
      %2618 = vmatprep.subr.mxu0 0.0
      %2619 = vmatpush1.msra.mxu0 0.0
      %2620 = vmatprep.subr.mxu0 0.0
      %2621 = vmatpush1.msra.mxu0 0.0
      %2622 = vmatprep.subr.mxu0 0.0
      %2623 = vmatpush1.msra.mxu0 0.0
      %2624 = vmatprep.subr.mxu0 0.0
      %2625 = vmatpush1.msra.mxu0 0.0
      %2626 = vmatprep.subr.mxu0 0.0
      %2627 = vmatpush1.msra.mxu0 0.0
      %2628 = vmatprep.subr.mxu0 0.0
      %2629 = vmatpush1.msra.mxu0 0.0
      %2630 = vmatprep.subr.mxu0 0.0
      %2631 = vmatpush1.msra.mxu0 0.0
      %2632 = vmatprep.subr.mxu0 0.0
      %2633 = vmatpush1.msra.mxu0 0.0
      %2634 = vmatprep.subr.mxu0 0.0
      %2635 = vmatpush1.msra.mxu0 0.0
      %2636 = vmatprep.subr.mxu0 0.0
      %2637 = vmatpush1.msra.mxu0 0.0
      %2638 = vmatprep.subr.mxu0 0.0
      %2639 = vmatpush1.msra.mxu0 0.0
      %2640 = vmatprep.subr.mxu0 0.0
      %2641 = vmatpush1.msra.mxu0 0.0
      %2642 = vmatprep.subr.mxu0 0.0
      %2643 = vmatpush1.msra.mxu0 0.0
      %2644 = vmatprep.subr.mxu0 0.0
      %2645 = vmatpush1.msra.mxu0 0.0
      %2646 = vmatprep.subr.mxu0 0.0
      %2647 = vmatpush1.msra.mxu0 0.0
      %2648 = vmatprep.subr.mxu0 0.0
      %2649 = vmatpush1.msra.mxu0 0.0
      %2650 = vmatprep.subr.mxu0 0.0
      %2651 = vmatpush1.msra.mxu0 0.0
      %2652 = vmatprep.subr.mxu0 0.0
      %2653 = vmatpush1.msra.mxu0 0.0
      %2654 = vmatprep.subr.mxu0 0.0
      %2655 = vmatpush1.msra.mxu0 0.0
      %2656 = vmatprep.subr.mxu0 0.0
      %2657 = vmatpush1.msra.mxu0 0.0
      %2658 = vmatprep.subr.mxu0 0.0
      %2659 = vmatpush1.msra.mxu0 0.0
      %2660 = vmatprep.subr.mxu0 0.0
      %2661 = vmatpush1.msra.mxu0 0.0
      %2662 = vmatprep.subr.mxu0 0.0
      %2663 = vmatpush1.msra.mxu0 0.0
      %2664 = vmatprep.subr.mxu0 0.0
      %2665 = vmatpush1.msra.mxu0 0.0
      %2666 = vmatprep.subr.mxu0 0.0
      %2667 = vmatpush1.msra.mxu0 0.0
      %2668 = vmatprep.subr.mxu0 0.0
      %2669 = vmatpush1.msra.mxu0 0.0
      %2670 = vmatprep.mubr.f32.mxu0 0.0
      %2671 = vmatmul.mubr.f32.gmra.mrb[0].mxu0 %v2542
      %v2672 = vpop.f32.mrb[0].mxu0
      %v2673 = vadd.f32 %v2539, %v2672
      %v2674 = vpop.f32.mrb[0].mxu0
      %2675 = vmatprep.mubr.f32.mxu0 0.0
      %2676 = vmatmul.mubr.f32.gmra.mrb[0].mxu0 %v2544
      %v2677 = vpop.f32.mrb[0].mxu0
      %v2678 = vadd.f32 %v2539, %v2677
      %v2679 = vpop.f32.mrb[0].mxu0
      %2680 = vmatprep.mubr.f32.mxu0 0.0
      %2681 = vmatmul.mubr.f32.gmra.mrb[0].mxu0 %v2546
      %v2682 = vpop.f32.mrb[0].mxu0
      %v2683 = vadd.f32 %v2539, %v2682
      %v2684 = vpop.f32.mrb[0].mxu0
      %2685 = vmatprep.mubr.f32.mxu0 0.0
      %2686 = vmatmul.mubr.f32.gmra.mrb[0].mxu0 %v2548
      %v2687 = vpop.f32.mrb[0].mxu0
      %v2688 = vadd.f32 %v2539, %v2687
      %v2689 = vpop.f32.mrb[0].mxu0
      %2690 = vmatprep.mubr.f32.mxu0 0.0
      %2691 = vmatmul.mubr.f32.gmra.mrb[0].mxu0 %v2550
      %v2692 = vpop.f32.mrb[0].mxu0
      %v2693 = vadd.f32 %v2539, %v2692
      %v2694 = vpop.f32.mrb[0].mxu0
      %2695 = vmatprep.mubr.f32.mxu0 0.0
      %2696 = vmatmul.mubr.f32.gmra.mrb[0].mxu0 %v2552
      %v2697 = vpop.f32.mrb[0].mxu0
      %v2698 = vadd.f32 %v2539, %v2697
      %v2699 = vpop.f32.mrb[0].mxu0
      %2700 = vmatprep.mubr.f32.mxu0 0.0
      %2701 = vmatmul.mubr.f32.gmra.mrb[0].mxu0 %v2554
      %v2702 = vpop.f32.mrb[0].mxu0
      %v2703 = vadd.f32 %v2539, %v2702
      %v2704 = vpop.f32.mrb[0].mxu0
      %2705 = vmatprep.mubr.f32.mxu0 0.0
      %2706 = vmatmul.mubr.f32.gmra.mrb[0].mxu0 %v2556
      %v2707 = vpop.f32.mrb[0].mxu0
      %v2708 = vadd.f32 %v2539, %v2707
      %v2709 = vpop.f32.mrb[0].mxu0
      %2710 = vmatprep.mubr.f32.mxu0 0.0
      %2711 = vmatmul.mubr.f32.gmra.mrb[0].mxu0 %v2558
      %v2712 = vpop.f32.mrb[0].mxu0
      %v2713 = vadd.f32 %v2539, %v2712
      %v2714 = vpop.f32.mrb[0].mxu0
      %2715 = vmatprep.mubr.f32.mxu0 0.0
      %2716 = vmatmul.mubr.f32.gmra.mrb[0].mxu0 %v2560
      %v2717 = vpop.f32.mrb[0].mxu0
      %v2718 = vadd.f32 %v2539, %v2717
      %v2719 = vpop.f32.mrb[0].mxu0
      %2720 = vmatprep.mubr.f32.mxu0 0.0
      %2721 = vmatmul.mubr.f32.gmra.mrb[0].mxu0 %v2562
      %v2722 = vpop.f32.mrb[0].mxu0
      %v2723 = vadd.f32 %v2539, %v2722
      %v2724 = vpop.f32.mrb[0].mxu0
      %2725 = vmatprep.mubr.f32.mxu0 0.0
      %2726 = vmatmul.mubr.f32.gmra.mrb[0].mxu0 %v2564
      %v2727 = vpop.f32.mrb[0].mxu0
      %v2728 = vadd.f32 %v2539, %v2727
      %v2729 = vpop.f32.mrb[0].mxu0
      %2730 = vmatprep.mubr.f32.mxu0 0.0
      %2731 = vmatmul.mubr.f32.gmra.mrb[0].mxu0 %v2566
      %v2732 = vpop.f32.mrb[0].mxu0
      %v2733 = vadd.f32 %v2539, %v2732
      %v2734 = vpop.f32.mrb[0].mxu0
      %2735 = vmatprep.mubr.f32.mxu0 0.0
      %2736 = vmatmul.mubr.f32.gmra.mrb[0].mxu0 %v2568
      %v2737 = vpop.f32.mrb[0].mxu0
      %v2738 = vadd.f32 %v2539, %v2737
      %v2739 = vpop.f32.mrb[0].mxu0
      %2740 = vmatprep.mubr.f32.mxu0 0.0
      %2741 = vmatmul.mubr.f32.gmra.mrb[0].mxu0 %v2570
      %v2742 = vpop.f32.mrb[0].mxu0
      %v2743 = vadd.f32 %v2539, %v2742
      %v2744 = vpop.f32.mrb[0].mxu0
      %2745 = vmatprep.mubr.f32.mxu0 0.0
      %2746 = vmatmul.mubr.f32.gmra.mrb[0].mxu0 %v2572
      %v2747 = vpop.f32.mrb[0].mxu0
      %v2748 = vadd.f32 %v2539, %v2747
      %v2749 = vpop.f32.mrb[0].mxu0
      %2750 = vmatprep.mubr.f32.mxu0 0.0
      %2751 = vmatmul.mubr.f32.gmra.mrb[0].mxu0 %v2574
      %v2752 = vpop.f32.mrb[0].mxu0
      %v2753 = vadd.f32 %v2539, %v2752
      %v2754 = vpop.f32.mrb[0].mxu0
      %2755 = vmatprep.mubr.f32.mxu0 0.0
      %2756 = vmatmul.mubr.f32.gmra.mrb[0].mxu0 %v2576
      %v2757 = vpop.f32.mrb[0].mxu0
      %v2758 = vadd.f32 %v2539, %v2757
      %v2759 = vpop.f32.mrb[0].mxu0
      %2760 = vmatprep.mubr.f32.mxu0 0.0
      %2761 = vmatmul.mubr.f32.gmra.mrb[0].mxu0 %v2578
      %v2762 = vpop.f32.mrb[0].mxu0
      %v2763 = vadd.f32 %v2539, %v2762
      %v2764 = vpop.f32.mrb[0].mxu0
      %2765 = vmatprep.mubr.f32.mxu0 0.0
      %2766 = vmatmul.mubr.f32.gmra.mrb[0].mxu0 %v2580
      %v2767 = vpop.f32.mrb[0].mxu0
      %v2768 = vadd.f32 %v2539, %v2767
      %v2769 = vpop.f32.mrb[0].mxu0
      %2770 = vmatprep.mubr.f32.mxu0 0.0
      %2771 = vmatmul.mubr.f32.gmra.mrb[0].mxu0 %v2582
      %v2772 = vpop.f32.mrb[0].mxu0
      %v2773 = vadd.f32 %v2539, %v2772
      %v2774 = vpop.f32.mrb[0].mxu0
      %2775 = vmatprep.mubr.f32.mxu0 0.0
      %2776 = vmatmul.mubr.f32.gmra.mrb[0].mxu0 %v2584
      %v2777 = vpop.f32.mrb[0].mxu0
      %v2778 = vadd.f32 %v2539, %v2777
      %v2779 = vpop.f32.mrb[0].mxu0
      %2780 = vmatprep.mubr.f32.mxu0 0.0
      %2781 = vmatmul.mubr.f32.gmra.mrb[0].mxu0 %v2586
      %v2782 = vpop.f32.mrb[0].mxu0
      %v2783 = vadd.f32 %v2539, %v2782
      %v2784 = vpop.f32.mrb[0].mxu0
      %2785 = vmatprep.mubr.f32.mxu0 0.0
      %2786 = vmatmul.mubr.f32.gmra.mrb[0].mxu0 %v2588
      %v2787 = vpop.f32.mrb[0].mxu0
      %v2788 = vadd.f32 %v2539, %v2787
      %v2789 = vpop.f32.mrb[0].mxu0
      %2790 = vmatprep.mubr.f32.mxu0 0.0
      %2791 = vmatmul.mubr.f32.gmra.mrb[0].mxu0 %v2590
      %v2792 = vpop.f32.mrb[0].mxu0
      %v2793 = vadd.f32 %v2539, %v2792
      %v2794 = vpop.f32.mrb[0].mxu0
      %2795 = vmatprep.mubr.f32.mxu0 0.0
      %2796 = vmatmul.mubr.f32.gmra.mrb[0].mxu0 %v2592
      %v2797 = vpop.f32.mrb[0].mxu0
      %v2798 = vadd.f32 %v2539, %v2797
      %v2799 = vpop.f32.mrb[0].mxu0
      %2800 = vmatprep.mubr.f32.mxu0 0.0
      %2801 = vmatmul.mubr.f32.gmra.mrb[0].mxu0 %v2594
      %v2802 = vpop.f32.mrb[0].mxu0
      %v2803 = vadd.f32 %v2539, %v2802
      %v2804 = vpop.f32.mrb[0].mxu0
      %2805 = vmatprep.mubr.f32.mxu0 0.0
      %2806 = vmatmul.mubr.f32.gmra.mrb[0].mxu0 %v2596
      %v2807 = vpop.f32.mrb[0].mxu0
      %v2808 = vadd.f32 %v2539, %v2807
      %v2809 = vpop.f32.mrb[0].mxu0
      %2810 = vmatprep.mubr.f32.mxu0 0.0
      %2811 = vmatmul.mubr.f32.gmra.mrb[0].mxu0 %v2598
      %v2812 = vpop.f32.mrb[0].mxu0
      %v2813 = vadd.f32 %v2539, %v2812
      %v2814 = vpop.f32.mrb[0].mxu0
      %2815 = vmatprep.mubr.f32.mxu0 0.0
      %2816 = vmatmul.mubr.f32.gmra.mrb[0].mxu0 %v2600
      %v2817 = vpop.f32.mrb[0].mxu0
      %v2818 = vadd.f32 %v2539, %v2817
      %v2819 = vpop.f32.mrb[0].mxu0
      %2820 = vmatprep.mubr.f32.mxu0 0.0
      %2821 = vmatmul.mubr.f32.gmra.mrb[0].mxu0 %v2602
      %v2822 = vpop.f32.mrb[0].mxu0
      %v2823 = vadd.f32 %v2539, %v2822
      %v2824 = vpop.f32.mrb[0].mxu0
      %2825 = vmatprep.mubr.f32.mxu0 0.0
      %2826 = vmatmul.mubr.f32.gmra.mrb[0].mxu0 %v2604
      %v2827 = vpop.f32.mrb[0].mxu0
      %v2828 = vadd.f32 %v2539, %v2827
      %v2829 = vpop.f32.mrb[0].mxu0
      %2830 = vdwg.mxu0
      %v2831 = vadd.f32 %v2673, %v279
      %v2832 = vadd.f32 %v2678, %v280
      %v2833 = vadd.f32 %v2683, %v281
      %v2834 = vadd.f32 %v2688, %v282
      %v2835 = vadd.f32 %v2693, %v283
      %v2836 = vadd.f32 %v2698, %v284
      %v2837 = vadd.f32 %v2703, %v285
      %v2838 = vadd.f32 %v2708, %v286
      %v2839 = vadd.f32 %v2713, %v287
      %v2840 = vadd.f32 %v2718, %v288
      %v2841 = vadd.f32 %v2723, %v289
      %v2842 = vadd.f32 %v2728, %v290
      %v2843 = vadd.f32 %v2733, %v291
      %v2844 = vadd.f32 %v2738, %v292
      %v2845 = vadd.f32 %v2743, %v293
      %v2846 = vadd.f32 %v2748, %v294
      %v2847 = vadd.f32 %v2753, %v295
      %v2848 = vadd.f32 %v2758, %v296
      %v2849 = vadd.f32 %v2763, %v297
      %v2850 = vadd.f32 %v2768, %v298
      %v2851 = vadd.f32 %v2773, %v299
      %v2852 = vadd.f32 %v2778, %v300
      %v2853 = vadd.f32 %v2783, %v301
      %v2854 = vadd.f32 %v2788, %v302
      %v2855 = vadd.f32 %v2793, %v303
      %v2856 = vadd.f32 %v2798, %v304
      %v2857 = vadd.f32 %v2803, %v305
      %v2858 = vadd.f32 %v2808, %v306
      %v2859 = vadd.f32 %v2813, %v307
      %v2860 = vadd.f32 %v2818, %v308
      %v2861 = vadd.f32 %v2823, %v309
      %v2862 = vadd.f32 %v2828, %v310
      %2863 = vst.msk [vmem:[%s278] sm:$0xff] %vm319, %v2831
      %2864 = vst.msk [vmem:[%s278 + $0x8] sm:$0xff] %vm319, %v2832
      %2865 = vst.msk [vmem:[%s278 + $0x10] sm:$0xff] %vm319, %v2833
      %2866 = vst.msk [vmem:[%s278 + $0x18] sm:$0xff] %vm319, %v2834
      %2867 = vst.msk [vmem:[%s278 + $0x20] sm:$0xff] %vm319, %v2835
      %2868 = vst.msk [vmem:[%s278 + $0x28] sm:$0xff] %vm319, %v2836
      %2869 = vst.msk [vmem:[%s278 + $0x30] sm:$0xff] %vm319, %v2837
      %2870 = vst.msk [vmem:[%s278 + $0x38] sm:$0xff] %vm319, %v2838
      %2871 = vst.msk [vmem:[%s278 + $0x40] sm:$0xff] %vm319, %v2839
      %2872 = vst.msk [vmem:[%s278 + $0x48] sm:$0xff] %vm319, %v2840
      %2873 = vst.msk [vmem:[%s278 + $0x50] sm:$0xff] %vm319, %v2841
      %2874 = vst.msk [vmem:[%s278 + $0x58] sm:$0xff] %vm319, %v2842
      %2875 = vst.msk [vmem:[%s278 + $0x60] sm:$0xff] %vm319, %v2843
      %2876 = vst.msk [vmem:[%s278 + $0x68] sm:$0xff] %vm319, %v2844
      %2877 = vst.msk [vmem:[%s278 + $0x70] sm:$0xff] %vm319, %v2845
      %2878 = vst.msk [vmem:[%s278 + $0x78] sm:$0xff] %vm319, %v2846
      %2879 = vst.msk [vmem:[%s278 + $0x80] sm:$0xff] %vm319, %v2847
      %2880 = vst.msk [vmem:[%s278 + $0x88] sm:$0xff] %vm319, %v2848
      %2881 = vst.msk [vmem:[%s278 + $0x90] sm:$0xff] %vm319, %v2849
      %2882 = vst.msk [vmem:[%s278 + $0x98] sm:$0xff] %vm319, %v2850
      %2883 = vst.msk [vmem:[%s278 + $0xa0] sm:$0xff] %vm319, %v2851
      %2884 = vst.msk [vmem:[%s278 + $0xa8] sm:$0xff] %vm319, %v2852
      %2885 = vst.msk [vmem:[%s278 + $0xb0] sm:$0xff] %vm319, %v2853
      %2886 = vst.msk [vmem:[%s278 + $0xb8] sm:$0xff] %vm319, %v2854
      %2887 = vst.msk [vmem:[%s278 + $0xc0] sm:$0xff] %vm319, %v2855
      %2888 = vst.msk [vmem:[%s278 + $0xc8] sm:$0xff] %vm319, %v2856
      %2889 = vst.msk [vmem:[%s278 + $0xd0] sm:$0xff] %vm319, %v2857
      %2890 = vst.msk [vmem:[%s278 + $0xd8] sm:$0xff] %vm319, %v2858
      %2891 = vst.msk [vmem:[%s278 + $0xe0] sm:$0xff] %vm319, %v2859
      %2892 = vst.msk [vmem:[%s278 + $0xe8] sm:$0xff] %vm319, %v2860
      %2893 = vst.msk [vmem:[%s278 + $0xf0] sm:$0xff] %vm319, %v2861
      %2894 = vst.msk [vmem:[%s278 + $0xf8] sm:$0xff] %vm319, %v2862
      %p2895 = scmp.lt.s32.totalorder %s18, 1
      %s2896 = scalar_select %p2895, %s18, 1
      %s2897 = smul.addr %s2896, 32
      %s2898 = smul.addr %s2897, 8
      %s2899 = scalar_lea.vmem %s7, %s2898
      // Predicated region
      $region49: #{tpu_custom_call.1} parent=47 // pred_check
        %p2900 = pneg %p188
      $region50: #{tpu_custom_call.1} parent=47 // pred_check_branch
        %2902 = sbr.rel (%p2900) target = $region52
      $region51: #{tpu_custom_call.1} parent=47 // pred_region
        _
      $region52: #{tpu_custom_call.1} parent=47 // pred_fallthru
        _
    $region48: #{tpu_custom_call.1} parent=5 // pred_fallthru
      _
    %p2903 = scmp.le.s32.totalorder 2, %s13
    // Predicated region
    $region53: #{tpu_custom_call.1} parent=5 // pred_check
      %p2904 = pneg %p2903
    $region54: #{tpu_custom_call.1} parent=5 // pred_check_branch
      %2906 = sbr.rel (%p2904) target = $region56
    $region55: #{tpu_custom_call.1} parent=5 // pred_region
      %s2907 = ssub.s32 %s13, 2
      // Predicated region
      $region57: #{tpu_custom_call.1} parent=55 // pred_check
        %p2908 = pneg %p194
      $region58: #{tpu_custom_call.1} parent=55 // pred_check_branch
        %2910 = sbr.rel (%p2908) target = $region60
      $region59: #{tpu_custom_call.1} parent=55 // pred_region
        %p2911 = scmp.lt.s32.totalorder %s19, 1
        %s2912 = scalar_select %p2911, %s19, 1
        %s2913 = smul.addr %s2912, 32
        %s2914 = smul.addr %s2913, 8
        %s2915 = scalar_lea.vmem %s7, %s2914
      $region60: #{tpu_custom_call.1} parent=55 // pred_fallthru
        _
    $region56: #{tpu_custom_call.1} parent=5 // pred_fallthru
      _
  $region6: #{tpu_custom_call.1} parent=0 // loop_footer
    %s17 = sadd.s32 1, %s13
  $region7: #{tpu_custom_call.1} parent=0 // loop_footer_branch
    %12 = sbr.rel target = $region3
  $region8: #{tpu_custom_call.1} parent=0 // loop_exit
    _

</llo_original>
